<compile_context>
chip_gen: v7x
topology: tpu7x:2x2x1
jax: 0.10.0
libtpu: 0.0.40
codegen_flags: <defaults>
</compile_context>

<pallas_src>
import functools

import jax
import jax.numpy as jnp
from jax.experimental import pallas as pl
from jax.experimental.pallas import tpu as pltpu

LANE = 128   # lane width / MXU N,K granularity
SUB = 8      # sublane count


def _round_up(x, m):
    return (x + m - 1) // m * m


def _conv_bn_relu_kernel(x_ref, w_ref, scale_ref, bias_ref, out_ref, *,
                         KH, KW, TH, WOUT, stride, dilation):
    """One (batch, row-tile, cout-tile) grid step of conv + folded BN + ReLU.

    x_ref    : (1, 1, TH_in, Wp, Cin_p) bf16  haloed input row tile (NHWC)
    w_ref    : (KH, KW, Cin_p, CO_T)    bf16  conv weights (HWIO), one Cout tile
    scale_ref: (1, CO_T) f32   folded BN scale (gamma * rsqrt(var + eps))
    bias_ref : (1, CO_T) f32   folded BN bias  (beta - mean * scale)
    out_ref  : (1, TH*WOUT, CO_T)  lane-dense output slab
    """
    co_t = out_ref.shape[-1]
    cin = x_ref.shape[-1]

    # f32 accumulator for this tile (<= ~64 KiB) -> lives in the vreg file.
    acc = jnp.zeros((TH * WOUT, co_t), jnp.float32)

    # kw outer / kh inner: the sublane-misaligned W slice is hoisted so the
    # relayout copy happens KW times instead of KH*KW times.
    for kw in range(KW):
        w0 = kw * dilation
        if stride == 1:
            xw = x_ref[0, 0, :, w0:w0 + WOUT, :]              # (TH_in, WOUT, Cin_p)
        else:
            xw = x_ref[0, 0, :, pl.ds(w0, WOUT, stride), :]   # sublane-strided load
        for kh in range(KH):
            h0 = kh * dilation
            xs = xw[h0:h0 + TH * stride]                      # dense slice on the major axis
            if stride > 1:
                xs = xs.reshape(TH, stride, WOUT, cin)[:, 0]
            xs = xs.reshape(TH * WOUT, cin)                   # layout-preserving (WOUT % 8 == 0)
            acc = acc + jnp.dot(xs, w_ref[kh, kw],
                                preferred_element_type=jnp.float32)

    # Fused eval-mode BatchNorm (folded scale/bias) + ReLU epilogue in f32.
    y = acc * scale_ref[...] + bias_ref[...]
    out_ref[0] = jnp.maximum(y, 0.0).astype(out_ref.dtype)


def basic_conv2d(x, w, gamma, beta, running_mean, running_var, *,
                 stride=1, padding=0, dilation=1, eps=1e-5):
    """Conv2d(bias=False) + BatchNorm2d(eval) + ReLU.

    x: (N, Cin, H, W) float32 (NCHW, PyTorch layout)
    w: (Cout, Cin, KH, KW)    (OIHW, PyTorch layout)
    gamma/beta/running_mean/running_var: (Cout,)
    returns: (N, Cout, Hout, Wout) float32
    """
    N, Cin, H, W = x.shape
    Cout, _, KH, KW = w.shape
    s, d, p = stride, dilation, padding

    Hout = (H + 2 * p - d * (KH - 1) - 1) // s + 1
    Wout = (W + 2 * p - d * (KW - 1) - 1) // s + 1

    Cin_p = _round_up(Cin, LANE)
    Cout_p = _round_up(Cout, LANE)
    CO_T = LANE
    n_co = Cout_p // CO_T
    Wout_p = _round_up(Wout, SUB)

    # Padded-input width needed so all Wout_p output columns are computable.
    Wp_t = (KW - 1) * d + (Wout_p - 1) * s + 1

    # Row-tile size: keep the accumulator around 128 rows x 128 lanes (64 KiB)
    # and the per-step VMEM budget v7x-safe (~40 MiB with double buffering).
    TH = max(1, min(Hout, max(1, 128 // Wout_p)))

    def _vmem_bytes(th):
        th_in = th * s + (KH - 1) * d
        in_blk = th_in * Wp_t * Cin_p * 2          # bf16 haloed input tile
        w_blk = KH * KW * Cin_p * CO_T * 2         # bf16 weight tile
        out_blk = th * Wout_p * CO_T * 4           # f32 output tile
        return 2 * (in_blk + w_blk + out_blk) + th * Wout_p * CO_T * 4

    while TH > 1 and _vmem_bytes(TH) > 40 * 1024 * 1024:
        TH -= 1

    n_rt = (Hout + TH - 1) // TH
    Hout_pad = n_rt * TH
    TH_in = TH * s + (KH - 1) * d
    Hp_t = (n_rt - 1) * TH * s + TH_in             # padded-input rows needed

    Hp = H + 2 * p
    Wp = W + 2 * p
    extra_h = max(0, Hp_t - Hp)
    extra_w = max(0, Wp_t - Wp)

    # NCHW -> NHWC, zero-pad spatially, pad channels to a lane multiple and
    # cast to bf16 for the MXU (accumulation stays f32 inside the kernel).
    x_nhwc = jnp.transpose(x, (0, 2, 3, 1))
    x_pad = jnp.pad(
        x_nhwc,
        ((0, 0), (p, p + extra_h), (p, p + extra_w), (0, Cin_p - Cin)),
    ).astype(jnp.bfloat16)
    Wp_a = x_pad.shape[2]

    # Haloed row tiles: tile t holds padded-input rows [t*TH*s, t*TH*s + TH_in)
    # so in-kernel tap slices never need boundary masks and per-step VMEM is
    # bounded regardless of image height.
    row_idx = (jnp.arange(n_rt) * (TH * s))[:, None] + jnp.arange(TH_in)[None, :]
    x_tiles = x_pad[:, row_idx]                    # (N, n_rt, TH_in, Wp_a, Cin_p)

    # OIHW -> HWIO, pad channels, bf16.
    w_hwio = jnp.transpose(w, (2, 3, 1, 0))
    w_hwio = jnp.pad(
        w_hwio, ((0, 0), (0, 0), (0, Cin_p - Cin), (0, Cout_p - Cout))
    ).astype(jnp.bfloat16)

    # Fold eval-mode BatchNorm into per-output-channel scale/bias (f32).
    inv_std = 1.0 / jnp.sqrt(running_var.astype(jnp.float32) + eps)
    scale = gamma.astype(jnp.float32) * inv_std
    bias = beta.astype(jnp.float32) - running_mean.astype(jnp.float32) * scale
    scale = jnp.pad(scale, (0, Cout_p - Cout)).reshape(1, Cout_p)
    bias = jnp.pad(bias, (0, Cout_p - Cout)).reshape(1, Cout_p)

    kernel = functools.partial(_conv_bn_relu_kernel,
                               KH=KH, KW=KW, TH=TH, WOUT=Wout_p,
                               stride=s, dilation=d)

    flops = 2 * N * Hout_pad * Wout_p * Cout_p * Cin_p * KH * KW
    bytes_accessed = (x_tiles.size * 2 + w_hwio.size * 2
                      + N * Hout_pad * Wout_p * Cout_p * 4)
    vmem_limit = int(min(96 * 1024 * 1024,
                         max(32 * 1024 * 1024, int(1.5 * _vmem_bytes(TH)))))

    out = pl.pallas_call(
        kernel,
        out_shape=jax.ShapeDtypeStruct((N, Hout_pad * Wout_p, Cout_p), x.dtype),
        grid_spec=pltpu.PrefetchScalarGridSpec(
            num_scalar_prefetch=0,
            grid=(N, n_rt, n_co),
            in_specs=[
                # Haloed input row tile: stays resident across the Cout axis.
                pl.BlockSpec((1, 1, TH_in, Wp_a, Cin_p),
                             lambda b, t, c: (b, t, 0, 0, 0)),
                # One 128-wide Cout slice of the weights.
                pl.BlockSpec((KH, KW, Cin_p, CO_T),
                             lambda b, t, c: (0, 0, 0, c)),
                pl.BlockSpec((1, CO_T), lambda b, t, c: (0, c)),
                pl.BlockSpec((1, CO_T), lambda b, t, c: (0, c)),
            ],
            out_specs=pl.BlockSpec((1, TH * Wout_p, CO_T),
                                   lambda b, t, c: (b, t, c)),
        ),
        compiler_params=pltpu.CompilerParams(
            dimension_semantics=("parallel", "parallel", "arbitrary"),
            vmem_limit_bytes=vmem_limit),
        cost_estimate=pl.CostEstimate(flops=flops, transcendentals=0,
                                      bytes_accessed=bytes_accessed),
    )(x_tiles, w_hwio, scale, bias)

    # (N, Hout_pad*Wout_p, Cout_p) -> slice off padding -> NCHW.
    out = out.reshape(N, Hout_pad, Wout_p, Cout_p)[:, :Hout, :Wout, :Cout]
    return jnp.transpose(out, (0, 3, 1, 2))


def _reference(x, w, gamma, beta, running_mean, running_var, *,
               stride, padding, dilation, eps):
    # Pure-JAX reference mirroring the PyTorch module (eval-mode BN, f32).
    y = jax.lax.conv_general_dilated(
        x, w,
        window_strides=(stride, stride),
        padding=[(padding, padding), (padding, padding)],
        rhs_dilation=(dilation, dilation),
        dimension_numbers=("NCHW", "OIHW", "NCHW"))
    scale = gamma / jnp.sqrt(running_var + eps)
    shift = beta - running_mean * scale
    y = y * scale[None, :, None, None] + shift[None, :, None, None]
    return jnp.maximum(y, 0.0)


def _run_case(key, N, Cin, Cout, H, W, K, stride, padding, dilation, eps=1e-5):
    kx, kw_, kg, kb, km, kv = jax.random.split(key, 6)
    x = jax.random.normal(kx, (N, Cin, H, W), dtype=jnp.float32)
    w = jax.random.normal(kw_, (Cout, Cin, K, K), dtype=jnp.float32)
    w = w * (1.0 / (Cin * K * K) ** 0.5)
    gamma = 1.0 + 0.1 * jax.random.normal(kg, (Cout,), dtype=jnp.float32)
    beta = 0.1 * jax.random.normal(kb, (Cout,), dtype=jnp.float32)
    running_mean = 0.1 * jax.random.normal(km, (Cout,), dtype=jnp.float32)
    running_var = jax.random.uniform(kv, (Cout,), dtype=jnp.float32,
                                     minval=0.5, maxval=1.5)

    out = basic_conv2d(x, w, gamma, beta, running_mean, running_var,
                       stride=stride, padding=padding, dilation=dilation,
                       eps=eps)
    out = jax.block_until_ready(out)

    ref = _reference(x, w, gamma, beta, running_mean, running_var,
                     stride=stride, padding=padding, dilation=dilation,
                     eps=eps)
    assert out.shape == ref.shape, (out.shape, ref.shape)
    # bf16 conv operands (f32 accumulation) -> loosened tolerance vs f32 ref.
    assert jnp.allclose(out, ref, atol=5e-2, rtol=5e-2), \
        float(jnp.max(jnp.abs(out - ref)))


if __name__ == "__main__":
    key = jax.random.PRNGKey(0)
    k1, k2 = jax.random.split(key)
    # 3x3 conv, padding=1 (the common BasicConv2d configuration in CorrNet).
    _run_case(k1, N=2, Cin=4, Cout=8, H=16, W=16, K=3,
              stride=1, padding=1, dilation=1)
    # 1x1 conv, padding=0.
    _run_case(k2, N=2, Cin=4, Cout=8, H=16, W=16, K=1,
              stride=1, padding=0, dilation=1)
    print("KERNEL_OK")
</pallas_src>

<mosaic_0001>
module attributes {stable_mosaic.version = 11 : i64} {
  func.func @_conv_bn_relu_kernel(%arg0: i32, %arg1: i32, %arg2: i32, %arg3: memref<1x1x10x18x128xbf16, #tpu.memory_space<vmem>>, %arg4: memref<3x3x128x128xbf16, #tpu.memory_space<vmem>>, %arg5: memref<1x128xf32, #tpu.memory_space<vmem>>, %arg6: memref<1x128xf32, #tpu.memory_space<vmem>>, %arg7: memref<1x128x128xf32, #tpu.memory_space<vmem>>) attributes {dimension_semantics = [#tpu.dimension_semantics<parallel>, #tpu.dimension_semantics<parallel>, #tpu.dimension_semantics<arbitrary>], iteration_bounds = array<i64: 2, 2, 1>, scalar_prefetch = 0 : i64, scratch_operands = 0 : i64, tpu.core_type = #tpu.core_type<tc>, window_params = [{transform_indices = @transform_0, window_bounds = array<i64: 1, 1, 10, 18, 128>}, {transform_indices = @transform_1, window_bounds = array<i64: 3, 3, 128, 128>}, {transform_indices = @transform_2, window_bounds = array<i64: 1, 128>}, {transform_indices = @transform_3, window_bounds = array<i64: 1, 128>}, {transform_indices = @transform_4, window_bounds = array<i64: 1, 128, 128>}]} {
    %cst = arith.constant 0.000000e+00 : f32
    %0 = vector.broadcast %cst : f32 to vector<128x128xf32>
    %c0 = arith.constant 0 : index
    %c0_0 = arith.constant 0 : index
    %c0_1 = arith.constant 0 : index
    %c0_2 = arith.constant 0 : index
    %c0_3 = arith.constant 0 : index
    %1 = vector.load %arg3[%c0, %c0_0, %c0_1, %c0_2, %c0_3] : memref<1x1x10x18x128xbf16, #tpu.memory_space<vmem>>, vector<1x1x10x16x128xbf16>
    %2 = vector.shape_cast %1 : vector<1x1x10x16x128xbf16> to vector<10x16x128xbf16>
    %3 = vector.extract_strided_slice %2 {offsets = [0, 0, 0], sizes = [8, 16, 128], strides = [1, 1, 1]} : vector<10x16x128xbf16> to vector<8x16x128xbf16>
    %4 = vector.shape_cast %3 : vector<8x16x128xbf16> to vector<128x128xbf16>
    %c0_4 = arith.constant 0 : index
    %c0_5 = arith.constant 0 : index
    %c0_6 = arith.constant 0 : index
    %c0_7 = arith.constant 0 : index
    %5 = vector.load %arg4[%c0_4, %c0_5, %c0_6, %c0_7] : memref<3x3x128x128xbf16, #tpu.memory_space<vmem>>, vector<1x1x128x128xbf16>
    %6 = vector.shape_cast %5 : vector<1x1x128x128xbf16> to vector<128x128xbf16>
    %cst_8 = arith.constant dense<0.000000e+00> : vector<128x128xf32>
    %7 = tpu.matmul %4, %6, %cst_8 {dimension_numbers = #tpu.dot_dimension_numbers<[1], [0], [0], [1], [0, 0, 1, 1], [], []>} : vector<128x128xbf16>, vector<128x128xbf16>, vector<128x128xf32> -> vector<128x128xf32>
    %8 = arith.addf %0, %7 : vector<128x128xf32>
    %9 = vector.extract_strided_slice %2 {offsets = [1, 0, 0], sizes = [8, 16, 128], strides = [1, 1, 1]} : vector<10x16x128xbf16> to vector<8x16x128xbf16>
    %10 = vector.shape_cast %9 : vector<8x16x128xbf16> to vector<128x128xbf16>
    %c1 = arith.constant 1 : index
    %c0_9 = arith.constant 0 : index
    %c0_10 = arith.constant 0 : index
    %c0_11 = arith.constant 0 : index
    %11 = vector.load %arg4[%c1, %c0_9, %c0_10, %c0_11] : memref<3x3x128x128xbf16, #tpu.memory_space<vmem>>, vector<1x1x128x128xbf16>
    %12 = vector.shape_cast %11 : vector<1x1x128x128xbf16> to vector<128x128xbf16>
    %cst_12 = arith.constant dense<0.000000e+00> : vector<128x128xf32>
    %13 = tpu.matmul %10, %12, %cst_12 {dimension_numbers = #tpu.dot_dimension_numbers<[1], [0], [0], [1], [0, 0, 1, 1], [], []>} : vector<128x128xbf16>, vector<128x128xbf16>, vector<128x128xf32> -> vector<128x128xf32>
    %14 = arith.addf %8, %13 : vector<128x128xf32>
    %15 = vector.extract_strided_slice %2 {offsets = [2, 0, 0], sizes = [8, 16, 128], strides = [1, 1, 1]} : vector<10x16x128xbf16> to vector<8x16x128xbf16>
    %16 = vector.shape_cast %15 : vector<8x16x128xbf16> to vector<128x128xbf16>
    %c2 = arith.constant 2 : index
    %c0_13 = arith.constant 0 : index
    %c0_14 = arith.constant 0 : index
    %c0_15 = arith.constant 0 : index
    %17 = vector.load %arg4[%c2, %c0_13, %c0_14, %c0_15] : memref<3x3x128x128xbf16, #tpu.memory_space<vmem>>, vector<1x1x128x128xbf16>
    %18 = vector.shape_cast %17 : vector<1x1x128x128xbf16> to vector<128x128xbf16>
    %cst_16 = arith.constant dense<0.000000e+00> : vector<128x128xf32>
    %19 = tpu.matmul %16, %18, %cst_16 {dimension_numbers = #tpu.dot_dimension_numbers<[1], [0], [0], [1], [0, 0, 1, 1], [], []>} : vector<128x128xbf16>, vector<128x128xbf16>, vector<128x128xf32> -> vector<128x128xf32>
    %20 = arith.addf %14, %19 : vector<128x128xf32>
    %c0_17 = arith.constant 0 : index
    %c0_18 = arith.constant 0 : index
    %c0_19 = arith.constant 0 : index
    %c1_20 = arith.constant 1 : index
    %c0_21 = arith.constant 0 : index
    %21 = vector.load %arg3[%c0_17, %c0_18, %c0_19, %c1_20, %c0_21] : memref<1x1x10x18x128xbf16, #tpu.memory_space<vmem>>, vector<1x1x10x16x128xbf16>
    %22 = vector.shape_cast %21 : vector<1x1x10x16x128xbf16> to vector<10x16x128xbf16>
    %23 = vector.extract_strided_slice %22 {offsets = [0, 0, 0], sizes = [8, 16, 128], strides = [1, 1, 1]} : vector<10x16x128xbf16> to vector<8x16x128xbf16>
    %24 = vector.shape_cast %23 : vector<8x16x128xbf16> to vector<128x128xbf16>
    %c0_22 = arith.constant 0 : index
    %c1_23 = arith.constant 1 : index
    %c0_24 = arith.constant 0 : index
    %c0_25 = arith.constant 0 : index
    %25 = vector.load %arg4[%c0_22, %c1_23, %c0_24, %c0_25] : memref<3x3x128x128xbf16, #tpu.memory_space<vmem>>, vector<1x1x128x128xbf16>
    %26 = vector.shape_cast %25 : vector<1x1x128x128xbf16> to vector<128x128xbf16>
    %cst_26 = arith.constant dense<0.000000e+00> : vector<128x128xf32>
    %27 = tpu.matmul %24, %26, %cst_26 {dimension_numbers = #tpu.dot_dimension_numbers<[1], [0], [0], [1], [0, 0, 1, 1], [], []>} : vector<128x128xbf16>, vector<128x128xbf16>, vector<128x128xf32> -> vector<128x128xf32>
    %28 = arith.addf %20, %27 : vector<128x128xf32>
    %29 = vector.extract_strided_slice %22 {offsets = [1, 0, 0], sizes = [8, 16, 128], strides = [1, 1, 1]} : vector<10x16x128xbf16> to vector<8x16x128xbf16>
    %30 = vector.shape_cast %29 : vector<8x16x128xbf16> to vector<128x128xbf16>
    %c1_27 = arith.constant 1 : index
    %c1_28 = arith.constant 1 : index
    %c0_29 = arith.constant 0 : index
    %c0_30 = arith.constant 0 : index
    %31 = vector.load %arg4[%c1_27, %c1_28, %c0_29, %c0_30] : memref<3x3x128x128xbf16, #tpu.memory_space<vmem>>, vector<1x1x128x128xbf16>
    %32 = vector.shape_cast %31 : vector<1x1x128x128xbf16> to vector<128x128xbf16>
    %cst_31 = arith.constant dense<0.000000e+00> : vector<128x128xf32>
    %33 = tpu.matmul %30, %32, %cst_31 {dimension_numbers = #tpu.dot_dimension_numbers<[1], [0], [0], [1], [0, 0, 1, 1], [], []>} : vector<128x128xbf16>, vector<128x128xbf16>, vector<128x128xf32> -> vector<128x128xf32>
    %34 = arith.addf %28, %33 : vector<128x128xf32>
    %35 = vector.extract_strided_slice %22 {offsets = [2, 0, 0], sizes = [8, 16, 128], strides = [1, 1, 1]} : vector<10x16x128xbf16> to vector<8x16x128xbf16>
    %36 = vector.shape_cast %35 : vector<8x16x128xbf16> to vector<128x128xbf16>
    %c2_32 = arith.constant 2 : index
    %c1_33 = arith.constant 1 : index
    %c0_34 = arith.constant 0 : index
    %c0_35 = arith.constant 0 : index
    %37 = vector.load %arg4[%c2_32, %c1_33, %c0_34, %c0_35] : memref<3x3x128x128xbf16, #tpu.memory_space<vmem>>, vector<1x1x128x128xbf16>
    %38 = vector.shape_cast %37 : vector<1x1x128x128xbf16> to vector<128x128xbf16>
    %cst_36 = arith.constant dense<0.000000e+00> : vector<128x128xf32>
    %39 = tpu.matmul %36, %38, %cst_36 {dimension_numbers = #tpu.dot_dimension_numbers<[1], [0], [0], [1], [0, 0, 1, 1], [], []>} : vector<128x128xbf16>, vector<128x128xbf16>, vector<128x128xf32> -> vector<128x128xf32>
    %40 = arith.addf %34, %39 : vector<128x128xf32>
    %c0_37 = arith.constant 0 : index
    %c0_38 = arith.constant 0 : index
    %c0_39 = arith.constant 0 : index
    %c2_40 = arith.constant 2 : index
    %c0_41 = arith.constant 0 : index
    %41 = vector.load %arg3[%c0_37, %c0_38, %c0_39, %c2_40, %c0_41] : memref<1x1x10x18x128xbf16, #tpu.memory_space<vmem>>, vector<1x1x10x16x128xbf16>
    %42 = vector.shape_cast %41 : vector<1x1x10x16x128xbf16> to vector<10x16x128xbf16>
    %43 = vector.extract_strided_slice %42 {offsets = [0, 0, 0], sizes = [8, 16, 128], strides = [1, 1, 1]} : vector<10x16x128xbf16> to vector<8x16x128xbf16>
    %44 = vector.shape_cast %43 : vector<8x16x128xbf16> to vector<128x128xbf16>
    %c0_42 = arith.constant 0 : index
    %c2_43 = arith.constant 2 : index
    %c0_44 = arith.constant 0 : index
    %c0_45 = arith.constant 0 : index
    %45 = vector.load %arg4[%c0_42, %c2_43, %c0_44, %c0_45] : memref<3x3x128x128xbf16, #tpu.memory_space<vmem>>, vector<1x1x128x128xbf16>
    %46 = vector.shape_cast %45 : vector<1x1x128x128xbf16> to vector<128x128xbf16>
    %cst_46 = arith.constant dense<0.000000e+00> : vector<128x128xf32>
    %47 = tpu.matmul %44, %46, %cst_46 {dimension_numbers = #tpu.dot_dimension_numbers<[1], [0], [0], [1], [0, 0, 1, 1], [], []>} : vector<128x128xbf16>, vector<128x128xbf16>, vector<128x128xf32> -> vector<128x128xf32>
    %48 = arith.addf %40, %47 : vector<128x128xf32>
    %49 = vector.extract_strided_slice %42 {offsets = [1, 0, 0], sizes = [8, 16, 128], strides = [1, 1, 1]} : vector<10x16x128xbf16> to vector<8x16x128xbf16>
    %50 = vector.shape_cast %49 : vector<8x16x128xbf16> to vector<128x128xbf16>
    %c1_47 = arith.constant 1 : index
    %c2_48 = arith.constant 2 : index
    %c0_49 = arith.constant 0 : index
    %c0_50 = arith.constant 0 : index
    %51 = vector.load %arg4[%c1_47, %c2_48, %c0_49, %c0_50] : memref<3x3x128x128xbf16, #tpu.memory_space<vmem>>, vector<1x1x128x128xbf16>
    %52 = vector.shape_cast %51 : vector<1x1x128x128xbf16> to vector<128x128xbf16>
    %cst_51 = arith.constant dense<0.000000e+00> : vector<128x128xf32>
    %53 = tpu.matmul %50, %52, %cst_51 {dimension_numbers = #tpu.dot_dimension_numbers<[1], [0], [0], [1], [0, 0, 1, 1], [], []>} : vector<128x128xbf16>, vector<128x128xbf16>, vector<128x128xf32> -> vector<128x128xf32>
    %54 = arith.addf %48, %53 : vector<128x128xf32>
    %55 = vector.extract_strided_slice %42 {offsets = [2, 0, 0], sizes = [8, 16, 128], strides = [1, 1, 1]} : vector<10x16x128xbf16> to vector<8x16x128xbf16>
    %56 = vector.shape_cast %55 : vector<8x16x128xbf16> to vector<128x128xbf16>
    %c2_52 = arith.constant 2 : index
    %c2_53 = arith.constant 2 : index
    %c0_54 = arith.constant 0 : index
    %c0_55 = arith.constant 0 : index
    %57 = vector.load %arg4[%c2_52, %c2_53, %c0_54, %c0_55] : memref<3x3x128x128xbf16, #tpu.memory_space<vmem>>, vector<1x1x128x128xbf16>
    %58 = vector.shape_cast %57 : vector<1x1x128x128xbf16> to vector<128x128xbf16>
    %cst_56 = arith.constant dense<0.000000e+00> : vector<128x128xf32>
    %59 = tpu.matmul %56, %58, %cst_56 {dimension_numbers = #tpu.dot_dimension_numbers<[1], [0], [0], [1], [0, 0, 1, 1], [], []>} : vector<128x128xbf16>, vector<128x128xbf16>, vector<128x128xf32> -> vector<128x128xf32>
    %60 = arith.addf %54, %59 : vector<128x128xf32>
    %c0_57 = arith.constant 0 : index
    %c0_58 = arith.constant 0 : index
    %61 = vector.load %arg5[%c0_57, %c0_58] : memref<1x128xf32, #tpu.memory_space<vmem>>, vector<1x128xf32>
    %62 = vector.broadcast %61 : vector<1x128xf32> to vector<128x128xf32>
    %63 = arith.mulf %60, %62 : vector<128x128xf32>
    %c0_59 = arith.constant 0 : index
    %c0_60 = arith.constant 0 : index
    %64 = vector.load %arg6[%c0_59, %c0_60] : memref<1x128xf32, #tpu.memory_space<vmem>>, vector<1x128xf32>
    %65 = vector.broadcast %64 : vector<1x128xf32> to vector<128x128xf32>
    %66 = arith.addf %63, %65 : vector<128x128xf32>
    %cst_61 = arith.constant 0.000000e+00 : f32
    %67 = vector.broadcast %cst_61 : f32 to vector<128x128xf32>
    %68 = arith.maximumf %66, %67 : vector<128x128xf32>
    %c0_62 = arith.constant 0 : index
    %c0_63 = arith.constant 0 : index
    %c0_64 = arith.constant 0 : index
    %69 = vector.load %arg7[%c0_62, %c0_63, %c0_64] : memref<1x128x128xf32, #tpu.memory_space<vmem>>, vector<1x128x128xf32>
    %70 = vector.shape_cast %69 : vector<1x128x128xf32> to vector<128x128xf32>
    %71 = vector.shape_cast %68 : vector<128x128xf32> to vector<1x128x128xf32>
    tpu.vector_store %arg7[%c0_62, %c0_63, %c0_64], %71 {strides = array<i32>} : memref<1x128x128xf32, #tpu.memory_space<vmem>>, vector<1x128x128xf32>,
    return
  }
  func.func @transform_0(%arg0: i32, %arg1: i32, %arg2: i32) -> (i32, i32, i32, i32, i32) {
    %c0_i32 = arith.constant 0 : i32
    %c0_i32_0 = arith.constant 0 : i32
    %c0_i32_1 = arith.constant 0 : i32
    %c0_i32_2 = arith.constant 0 : i32
    return %arg0, %arg1, %c0_i32, %c0_i32_0, %c0_i32_1 : i32, i32, i32, i32, i32
  }
  func.func @transform_1(%arg0: i32, %arg1: i32, %arg2: i32) -> (i32, i32, i32, i32) {
    %c0_i32 = arith.constant 0 : i32
    %c0_i32_0 = arith.constant 0 : i32
    %c0_i32_1 = arith.constant 0 : i32
    %c0_i32_2 = arith.constant 0 : i32
    return %c0_i32, %c0_i32_0, %c0_i32_1, %arg2 : i32, i32, i32, i32
  }
  func.func @transform_2(%arg0: i32, %arg1: i32, %arg2: i32) -> (i32, i32) {
    %c0_i32 = arith.constant 0 : i32
    %c0_i32_0 = arith.constant 0 : i32
    return %c0_i32, %arg2 : i32, i32
  }
  func.func @transform_3(%arg0: i32, %arg1: i32, %arg2: i32) -> (i32, i32) {
    %c0_i32 = arith.constant 0 : i32
    %c0_i32_0 = arith.constant 0 : i32
    return %c0_i32, %arg2 : i32, i32
  }
  func.func @transform_4(%arg0: i32, %arg1: i32, %arg2: i32) -> (i32, i32, i32) {
    %c0_i32 = arith.constant 0 : i32
    return %arg0, %arg1, %arg2 : i32, i32, i32
  }
}

</mosaic_0001>

<llo_original>
// kernel: tpu_custom_call.1
$region0: #{tpu_custom_call.1}
  #allocation0 [shape = 'u32[]', space=smem, size = 0x4, offset = 0x4, fixed_abs, tag = 'smem constant byte address 0x4 - core index']
  #allocation1 [shape = 'u32[144,128]{1,0:T(1,128)}', space=vmem, size = 0x12000, scoped, tag = 'internal scratch']
  %s0 = inlined_call_operand.vmem [shape: bf16[2,2,10,18,128], index: 0, kind: input, shape index: {}]
  %s1 = inlined_call_operand.vmem [shape: bf16[3,3,128,128], index: 1, kind: input, shape index: {}]
  %s2 = inlined_call_operand.vmem [shape: f32[1,128], index: 2, kind: input, shape index: {}]
  %s3 = inlined_call_operand.vmem [shape: f32[1,128], index: 3, kind: input, shape index: {}]
  %s4 = inlined_call_operand.hbm [shape: f32[2,256,128], index: 4, kind: output, shape index: {}]
  %s5 = sld [smem:[#allocation0]]
  $region49: #{tpu_custom_call.1} parent=0
    _
  %s7 = ssub.s32 1, %s5
  %s8 = scalar_select 0, %s7, %s5
  $region1: #{tpu_custom_call.1} parent=0
    #allocation2 [shape = 'u8[131072]{0}', space=vmem, size = 0x20000, scoped, tag = 'output window, operand 0']
    #allocation3 [shape = 's32[2]{0}', space=sflag, size = 0x8, scoped, tag = 'scoped memory for tpu_custom_call.1']
    %9 = vsyncpa [#allocation3], 0
    %s10 = scalar_lea.sflag [#allocation3], 1
    %11 = vsyncpa %s10, 0
    loop: start=0, step=1, limit=6
    $region2: #{tpu_custom_call.1} parent=1 // loop_pre_header
      _
    $region3: #{tpu_custom_call.1} parent=1 // loop_header
      %s13 = sphi 0, %s17
      %p14 = scmp.ge.s32.totalorder %s13, 6
      %s20 = sphi 0, %s39
      %s21 = sphi 0, %s35
      %s22 = sphi 0, %s31
      %s23 = sphi 0, %s20
      %s24 = sphi 0, %s21
      %s25 = sphi 0, %s22
      %s26 = sphi 0, %s23
      %s27 = sphi 0, %s24
      %s28 = sphi 0, %s25
      %s44 = sphi 0, %s46
      %s47 = sphi 0, %s44
      %s48 = sphi 0, %s47
      %s64 = sphi 0, %s48
      %s70 = sphi 0, %s72
      %s73 = sphi 0, %s70
      %s74 = sphi 0, %s73
      %s90 = sphi 0, %s74
      %s96 = sphi 0, %s98
      %s99 = sphi 0, %s96
      %s100 = sphi 0, %s99
      %s116 = sphi 0, %s100
      %s122 = sphi 0, %s124
      %s125 = sphi 0, %s122
      %s126 = sphi 0, %s125
      %s142 = sphi 0, %s126
      %s152 = sphi 0, %s154
      %s155 = sphi 0, %s152
      %s156 = sphi 0, %s155
      %s172 = sphi 0, %s156
    $region4: #{tpu_custom_call.1} parent=1 // loop_header_branch
      %16 = sbr.rel (%p14) target = $region8
    $region5: #{tpu_custom_call.1} parent=1 // loop_body
      %s18 = ssub.s32 %s13, 1
      %s19 = ssub.s32 %s13, 2
      %s29 = sadd.s32 1, %s22
      %p30 = scmp.ge.s32.totalorder %s29, 1
      %s31 = scalar_select %p30, 0, %s29
      %s32 = sadd.s32 1, %s21
      %s33 = scalar_select %p30, %s32, %s21
      %p34 = scmp.ge.s32.totalorder %s33, 2
      %s35 = scalar_select %p34, 0, %s33
      %s36 = sadd.s32 1, %s20
      %s37 = scalar_select %p34, %s36, %s20
      %p38 = scmp.ge.s32.totalorder %s37, 2
      %s39 = scalar_select %p38, 0, %s37
      %s40 = ssub.s32 %s20, %s39
      %s41 = ssub.s32 %s21, %s35
      %s42 = sor.u32 %s40, %s41
      %p43 = scmp.eq.s32.totalorder %s42, 0
      %s45 = sadd.s32 %s44, 1
      %s46 = scalar_select %p43, %s44, %s45
      %p49 = pneg %p43
      %p50 = scmp.eq.s32.totalorder %s13, 3
      %p51 = por %p49, %p50
      %p52 = scmp.ne.s32.totalorder %s44, %s47
      %p53 = scmp.eq.s32.totalorder %s13, 0
      %p54 = por %p52, %p53
      %p55 = scmp.ne.s32.totalorder %s44, %s47
      %p56 = scmp.eq.s32.totalorder %s18, 3
      %p57 = por %p55, %p56
      %p58 = scmp.ne.s32.totalorder %s47, %s48
      %p59 = scmp.eq.s32.totalorder %s18, 0
      %p60 = por %p58, %p59
      %p61 = scmp.ne.s32.totalorder %s47, %s48
      %p62 = scmp.eq.s32.totalorder %s19, 3
      %p63 = por %p61, %p62
      %p65 = scmp.ne.s32.totalorder %s48, %s64
      %p66 = scmp.eq.s32.totalorder %s19, 0
      %p67 = por %p65, %p66
      %s68 = ssub.s32 %s22, %s31
      %p69 = scmp.eq.s32.totalorder %s68, 0
      %s71 = sadd.s32 %s70, 1
      %s72 = scalar_select %p69, %s70, %s71
      %p75 = pneg %p69
      %p76 = scmp.eq.s32.totalorder %s13, 3
      %p77 = por %p75, %p76
      %p78 = scmp.ne.s32.totalorder %s70, %s73
      %p79 = scmp.eq.s32.totalorder %s13, 0
      %p80 = por %p78, %p79
      %p81 = scmp.ne.s32.totalorder %s70, %s73
      %p82 = scmp.eq.s32.totalorder %s18, 3
      %p83 = por %p81, %p82
      %p84 = scmp.ne.s32.totalorder %s73, %s74
      %p85 = scmp.eq.s32.totalorder %s18, 0
      %p86 = por %p84, %p85
      %p87 = scmp.ne.s32.totalorder %s73, %s74
      %p88 = scmp.eq.s32.totalorder %s19, 3
      %p89 = por %p87, %p88
      %p91 = scmp.ne.s32.totalorder %s74, %s90
      %p92 = scmp.eq.s32.totalorder %s19, 0
      %p93 = por %p91, %p92
      %s94 = ssub.s32 %s22, %s31
      %p95 = scmp.eq.s32.totalorder %s94, 0
      %s97 = sadd.s32 %s96, 1
      %s98 = scalar_select %p95, %s96, %s97
      %p101 = pneg %p95
      %p102 = scmp.eq.s32.totalorder %s13, 3
      %p103 = por %p101, %p102
      %p104 = scmp.ne.s32.totalorder %s96, %s99
      %p105 = scmp.eq.s32.totalorder %s13, 0
      %p106 = por %p104, %p105
      %p107 = scmp.ne.s32.totalorder %s96, %s99
      %p108 = scmp.eq.s32.totalorder %s18, 3
      %p109 = por %p107, %p108
      %p110 = scmp.ne.s32.totalorder %s99, %s100
      %p111 = scmp.eq.s32.totalorder %s18, 0
      %p112 = por %p110, %p111
      %p113 = scmp.ne.s32.totalorder %s99, %s100
      %p114 = scmp.eq.s32.totalorder %s19, 3
      %p115 = por %p113, %p114
      %p117 = scmp.ne.s32.totalorder %s100, %s116
      %p118 = scmp.eq.s32.totalorder %s19, 0
      %p119 = por %p117, %p118
      %s120 = ssub.s32 %s22, %s31
      %p121 = scmp.eq.s32.totalorder %s120, 0
      %s123 = sadd.s32 %s122, 1
      %s124 = scalar_select %p121, %s122, %s123
      %p127 = pneg %p121
      %p128 = scmp.eq.s32.totalorder %s13, 3
      %p129 = por %p127, %p128
      %p130 = scmp.ne.s32.totalorder %s122, %s125
      %p131 = scmp.eq.s32.totalorder %s13, 0
      %p132 = por %p130, %p131
      %p133 = scmp.ne.s32.totalorder %s122, %s125
      %p134 = scmp.eq.s32.totalorder %s18, 3
      %p135 = por %p133, %p134
      %p136 = scmp.ne.s32.totalorder %s125, %s126
      %p137 = scmp.eq.s32.totalorder %s18, 0
      %p138 = por %p136, %p137
      %p139 = scmp.ne.s32.totalorder %s125, %s126
      %p140 = scmp.eq.s32.totalorder %s19, 3
      %p141 = por %p139, %p140
      %p143 = scmp.ne.s32.totalorder %s126, %s142
      %p144 = scmp.eq.s32.totalorder %s19, 0
      %p145 = por %p143, %p144
      %s146 = ssub.s32 %s20, %s39
      %s147 = ssub.s32 %s21, %s35
      %s148 = sor.u32 %s146, %s147
      %s149 = ssub.s32 %s22, %s31
      %s150 = sor.u32 %s148, %s149
      %p151 = scmp.eq.s32.totalorder %s150, 0
      %s153 = sadd.s32 %s152, 1
      %s154 = scalar_select %p151, %s152, %s153
      %p157 = pneg %p151
      %p158 = scmp.eq.s32.totalorder %s13, 3
      %p159 = por %p157, %p158
      %p160 = scmp.ne.s32.totalorder %s152, %s155
      %p161 = scmp.eq.s32.totalorder %s13, 0
      %p162 = por %p160, %p161
      %p163 = scmp.ne.s32.totalorder %s152, %s155
      %p164 = scmp.eq.s32.totalorder %s18, 3
      %p165 = por %p163, %p164
      %p166 = scmp.ne.s32.totalorder %s155, %s156
      %p167 = scmp.eq.s32.totalorder %s18, 0
      %p168 = por %p166, %p167
      %p169 = scmp.ne.s32.totalorder %s155, %s156
      %p170 = scmp.eq.s32.totalorder %s19, 3
      %p171 = por %p169, %p170
      %p173 = scmp.ne.s32.totalorder %s156, %s172
      %p174 = scmp.eq.s32.totalorder %s19, 0
      %p175 = por %p173, %p174
      %p176 = scmp.le.s32.totalorder 1, %s13
      %p177 = scmp.lt.s32.totalorder %s13, 5
      %p178 = pnand %p176, %p177
      %p179 = pneg %p178
      // Predicated region
      $region9: #{tpu_custom_call.1} parent=5 // pred_check
        _
      $region10: #{tpu_custom_call.1} parent=5 // pred_check_branch
        %181 = sbr.rel (%p178) target = $region12
      $region11: #{tpu_custom_call.1} parent=5 // pred_region
        %s182 = ssub.s32 %s13, 1
        // Predicated region
        $region13: #{tpu_custom_call.1} parent=11 // pred_check
          %p183 = pneg %p86
        $region14: #{tpu_custom_call.1} parent=11 // pred_check_branch
          %185 = sbr.rel (%p183) target = $region16
        $region15: #{tpu_custom_call.1} parent=11 // pred_region
          %p186 = scmp.lt.s32.totalorder %s25, 0
          %s187 = scalar_select %p186, %s25, 0
          %s188 = smul.addr %s187, 4
          %s189 = scalar_lea.vmem %s1, %s188
        $region16: #{tpu_custom_call.1} parent=11 // pred_fallthru
          _
        // Predicated region
        $region17: #{tpu_custom_call.1} parent=11 // pred_check
          %p190 = pneg %p112
        $region18: #{tpu_custom_call.1} parent=11 // pred_check_branch
          %192 = sbr.rel (%p190) target = $region20
        $region19: #{tpu_custom_call.1} parent=11 // pred_region
          %p193 = scmp.lt.s32.totalorder %s25, 0
          %s194 = scalar_select %p193, %s25, 0
          %s195 = scalar_lea.vmem %s2, %s194
        $region20: #{tpu_custom_call.1} parent=11 // pred_fallthru
          _
        // Predicated region
        $region21: #{tpu_custom_call.1} parent=11 // pred_check
          %p196 = pneg %p138
        $region22: #{tpu_custom_call.1} parent=11 // pred_check_branch
          %198 = sbr.rel (%p196) target = $region24
        $region23: #{tpu_custom_call.1} parent=11 // pred_region
          %p199 = scmp.lt.s32.totalorder %s25, 0
          %s200 = scalar_select %p199, %s25, 0
          %s201 = scalar_lea.vmem %s3, %s200
        $region24: #{tpu_custom_call.1} parent=11 // pred_fallthru
          _
      $region12: #{tpu_custom_call.1} parent=5 // pred_fallthru
        _
      %p202 = scmp.lt.s32.totalorder %s13, 4
      // Predicated region
      $region25: #{tpu_custom_call.1} parent=5 // pred_check
        %p203 = pneg %p202
      $region26: #{tpu_custom_call.1} parent=5 // pred_check_branch
        %205 = sbr.rel (%p203) target = $region28
      $region27: #{tpu_custom_call.1} parent=5 // pred_region
        // Predicated region
        $region29: #{tpu_custom_call.1} parent=27 // pred_check
          %p206 = pneg %p54
        $region30: #{tpu_custom_call.1} parent=27 // pred_check_branch
          %208 = sbr.rel (%p206) target = $region32
        $region31: #{tpu_custom_call.1} parent=27 // pred_region
          %p209 = scmp.lt.s32.totalorder %s20, 1
          %s210 = scalar_select %p209, %s20, 1
          %p211 = scmp.lt.s32.totalorder %s21, 1
          %s212 = scalar_select %p211, %s21, 1
          %s213 = smul.addr %s212, 30
          %s214 = smul.addr %s210, 60
          %s215 = sadd.s32 %s213, %s214
          %s216 = smul.addr %s215, 4
          %s217 = scalar_lea.vmem %s0, %s216
        $region32: #{tpu_custom_call.1} parent=27 // pred_fallthru
          _
      $region28: #{tpu_custom_call.1} parent=5 // pred_fallthru
        _
      %p218 = scmp.le.s32.totalorder 1, %s13
      %p219 = scmp.lt.s32.totalorder %s13, 5
      %p220 = pnand %p218, %p219
      %p221 = pneg %p220
      // Predicated region
      $region33: #{tpu_custom_call.1} parent=5 // pred_check
        _
      $region34: #{tpu_custom_call.1} parent=5 // pred_check_branch
        %223 = sbr.rel (%p220) target = $region36
      $region35: #{tpu_custom_call.1} parent=5 // pred_region
        %s224 = ssub.s32 %s13, 1
        %p225 = scmp.lt.s32.totalorder %s23, 1
        %s226 = scalar_select %p225, %s23, 1
        %p227 = scmp.lt.s32.totalorder %s24, 1
        %s228 = scalar_select %p227, %s24, 1
        %s229 = smul.addr %s228, 30
        %s230 = smul.addr %s226, 60
        %s231 = sadd.s32 %s229, %s230
        %s232 = smul.addr %s231, 4
        %s233 = scalar_lea.vmem %s0, %s232
        %p234 = pneg %p60
        %p235 = pneg %p57
        %p236 = scmp.lt.s32.totalorder %s25, 0
        %s237 = scalar_select %p236, %s25, 0
        %s238 = smul.addr %s237, 4
        %s239 = scalar_lea.vmem %s1, %s238
        %p240 = pneg %p86
        %p241 = pneg %p83
        %p242 = scmp.lt.s32.totalorder %s25, 0
        %s243 = scalar_select %p242, %s25, 0
        %s244 = scalar_lea.vmem %s2, %s243
        %p245 = pneg %p112
        %p246 = pneg %p109
        %p247 = scmp.lt.s32.totalorder %s25, 0
        %s248 = scalar_select %p247, %s25, 0
        %s249 = scalar_lea.vmem %s3, %s248
        %p250 = pneg %p138
        %p251 = pneg %p135
        %p252 = pneg %p168
        %p253 = pneg %p165
        %s254 = sand.u32 %s155, 1
        %s255 = scalar_lea.sflag [#allocation3], %s254
        %s256 = sand.u32 %s155, 1
        %s257 = smul.addr %s256, 128
        %s258 = scalar_lea.vmem [#allocation2], %s257
        %p259 = scmp.lt.s32.totalorder %s23, 1
        %s260 = scalar_select %p259, %s23, 1
        %p261 = scmp.lt.s32.totalorder %s24, 1
        %s262 = scalar_select %p261, %s24, 1
        %s263 = smul.addr %s262, 30
        %s264 = smul.addr %s260, 60
        %s265 = sadd.s32 %s263, %s264
        %s266 = smul.addr %s265, 4
        %s267 = scalar_lea.vmem %s0, %s266
        %p268 = scmp.lt.s32.totalorder %s25, 0
        %s269 = scalar_select %p268, %s25, 0
        %s270 = smul.addr %s269, 4
        %s271 = scalar_lea.vmem %s1, %s270
        %p272 = scmp.lt.s32.totalorder %s25, 0
        %s273 = scalar_select %p272, %s25, 0
        %s274 = scalar_lea.vmem %s2, %s273
        %p275 = scmp.lt.s32.totalorder %s25, 0
        %s276 = scalar_select %p275, %s25, 0
        %s277 = scalar_lea.vmem %s3, %s276
        %s278 = smul.u32 16, %s24
        %v280 = vld [vmem:[%s267] sm:$0xf]
        %v281 = vld [vmem:[%s267 + $0x4] sm:$0xf]
        %v282 = vld [vmem:[%s267 + $0xc] sm:$0xf]
        %v283 = vld [vmem:[%s267 + $0x10] sm:$0xf]
        %v284 = vld [vmem:[%s267 + $0x18] sm:$0xf]
        %v285 = vld [vmem:[%s267 + $0x1c] sm:$0xf]
        %v286 = vld [vmem:[%s267 + $0x24] sm:$0xf]
        %v287 = vld [vmem:[%s267 + $0x28] sm:$0xf]
        %v288 = vld [vmem:[%s267 + $0x30] sm:$0xf]
        %v289 = vld [vmem:[%s267 + $0x34] sm:$0xf]
        %v290 = vld [vmem:[%s267 + $0x3c] sm:$0xf]
        %v291 = vld [vmem:[%s267 + $0x40] sm:$0xf]
        %v292 = vld [vmem:[%s267 + $0x48] sm:$0xf]
        %v293 = vld [vmem:[%s267 + $0x4c] sm:$0xf]
        %v294 = vld [vmem:[%s267 + $0x54] sm:$0xf]
        %v295 = vld [vmem:[%s267 + $0x58] sm:$0xf]
        %v296 = vld [vmem:[%s267 + $0x60] sm:$0xf]
        %v297 = vld [vmem:[%s267 + $0x64] sm:$0xf]
        %v298 = vld [vmem:[%s267 + $0x6c] sm:$0xf]
        %v299 = vld [vmem:[%s267 + $0x70] sm:$0xf]
        %v300 = vld [vmem:[%s271] sm:$0xf]
        %v301 = vld [vmem:[%s271 + $0x4] sm:$0xf]
        %v302 = vld [vmem:[%s271 + $0x8] sm:$0xf]
        %v303 = vld [vmem:[%s271 + $0xc] sm:$0xf]
        %v304 = vld [vmem:[%s271 + $0x10] sm:$0xf]
        %v305 = vld [vmem:[%s271 + $0x14] sm:$0xf]
        %v306 = vld [vmem:[%s271 + $0x18] sm:$0xf]
        %v307 = vld [vmem:[%s271 + $0x1c] sm:$0xf]
        %v308 = vld [vmem:[%s271 + $0x20] sm:$0xf]
        %v309 = vld [vmem:[%s271 + $0x24] sm:$0xf]
        %v310 = vld [vmem:[%s271 + $0x28] sm:$0xf]
        %v311 = vld [vmem:[%s271 + $0x2c] sm:$0xf]
        %v312 = vld [vmem:[%s271 + $0x30] sm:$0xf]
        %v313 = vld [vmem:[%s271 + $0x34] sm:$0xf]
        %v314 = vld [vmem:[%s271 + $0x38] sm:$0xf]
        %v315 = vld [vmem:[%s271 + $0x3c] sm:$0xf]
        %s316 = scalar_lea.vmem %s271, 192
        %v317 = vld [vmem:[%s316] sm:$0xf]
        %v318 = vld [vmem:[%s316 + $0x4] sm:$0xf]
        %v319 = vld [vmem:[%s316 + $0x8] sm:$0xf]
        %v320 = vld [vmem:[%s316 + $0xc] sm:$0xf]
        %v321 = vld [vmem:[%s316 + $0x10] sm:$0xf]
        %v322 = vld [vmem:[%s316 + $0x14] sm:$0xf]
        %v323 = vld [vmem:[%s316 + $0x18] sm:$0xf]
        %v324 = vld [vmem:[%s316 + $0x1c] sm:$0xf]
        %v325 = vld [vmem:[%s316 + $0x20] sm:$0xf]
        %v326 = vld [vmem:[%s316 + $0x24] sm:$0xf]
        %v327 = vld [vmem:[%s316 + $0x28] sm:$0xf]
        %v328 = vld [vmem:[%s316 + $0x2c] sm:$0xf]
        %v329 = vld [vmem:[%s316 + $0x30] sm:$0xf]
        %v330 = vld [vmem:[%s316 + $0x34] sm:$0xf]
        %v331 = vld [vmem:[%s316 + $0x38] sm:$0xf]
        %v332 = vld [vmem:[%s316 + $0x3c] sm:$0xf]
        %v349 = vunpack.c.l.b16 %v282
        %v350 = vunpack.c.l.b16 %v283
        %v351 = vunpack.c.l.b16 %v284
        %v352 = vunpack.c.l.b16 %v285
        %v353 = vunpack.c.l.b16 %v286
        %v354 = vunpack.c.l.b16 %v287
        %v355 = vunpack.c.l.b16 %v288
        %v356 = vunpack.c.l.b16 %v289
        %v357 = vunpack.c.l.b16 %v290
        %v358 = vunpack.c.l.b16 %v291
        %v359 = vunpack.c.l.b16 %v292
        %v360 = vunpack.c.l.b16 %v293
        %v361 = vunpack.c.l.b16 %v294
        %v362 = vunpack.c.l.b16 %v295
        %v363 = vunpack.c.l.b16 %v296
        %v364 = vunpack.c.l.b16 %v297
        %v365 = vpack.c.b16 %v350, %v349
        %v366 = vpack.c.b16 %v352, %v351
        %v367 = vpack.c.b16 %v354, %v353
        %v368 = vpack.c.b16 %v356, %v355
        %v369 = vpack.c.b16 %v358, %v357
        %v370 = vpack.c.b16 %v360, %v359
        %v371 = vpack.c.b16 %v362, %v361
        %v372 = vpack.c.b16 %v364, %v363
        %v397 = vunpack.c.l.b16 %v317
        %v398 = vunpack.c.l.b16 %v318
        %v399 = vunpack.c.l.b16 %v319
        %v400 = vunpack.c.l.b16 %v320
        %v401 = vunpack.c.l.b16 %v321
        %v402 = vunpack.c.l.b16 %v322
        %v403 = vunpack.c.l.b16 %v323
        %v404 = vunpack.c.l.b16 %v324
        %v405 = vunpack.c.l.b16 %v325
        %v406 = vunpack.c.l.b16 %v326
        %v407 = vunpack.c.l.b16 %v327
        %v408 = vunpack.c.l.b16 %v328
        %v409 = vunpack.c.l.b16 %v329
        %v410 = vunpack.c.l.b16 %v330
        %v411 = vunpack.c.l.b16 %v331
        %v412 = vunpack.c.l.b16 %v332
        %v413 = vpack.c.b16 %v398, %v397
        %v414 = vpack.c.b16 %v400, %v399
        %v415 = vpack.c.b16 %v402, %v401
        %v416 = vpack.c.b16 %v404, %v403
        %v417 = vpack.c.b16 %v406, %v405
        %v418 = vpack.c.b16 %v408, %v407
        %v419 = vpack.c.b16 %v410, %v409
        %v420 = vpack.c.b16 %v412, %v411
        %429 = vmatprep.subr.bf16.mxu0 0
        %430 = vmatpush1.bf16.msra.mxu0 %v413
        %431 = vmatprep.subr.bf16.mxu0 0
        %432 = vmatpush1.bf16.msra.mxu0 %v414
        %433 = vmatprep.subr.bf16.mxu0 0
        %434 = vmatpush1.bf16.msra.mxu0 %v415
        %435 = vmatprep.subr.bf16.mxu0 0
        %436 = vmatpush1.bf16.msra.mxu0 %v416
        %437 = vmatprep.subr.bf16.mxu0 0
        %438 = vmatpush1.bf16.msra.mxu0 %v417
        %439 = vmatprep.subr.bf16.mxu0 0
        %440 = vmatpush1.bf16.msra.mxu0 %v418
        %441 = vmatprep.subr.bf16.mxu0 0
        %442 = vmatpush1.bf16.msra.mxu0 %v419
        %443 = vmatprep.subr.bf16.mxu0 0
        %444 = vmatpush1.bf16.msra.mxu0 %v420
        %445 = vmatprep.subr.bf16.mxu0 0
        %446 = vmatpush1.bf16.msra.mxu0 0
        %447 = vmatprep.subr.bf16.mxu0 0
        %448 = vmatpush1.bf16.msra.mxu0 0
        %449 = vmatprep.subr.bf16.mxu0 0
        %450 = vmatpush1.bf16.msra.mxu0 0
        %451 = vmatprep.subr.bf16.mxu0 0
        %452 = vmatpush1.bf16.msra.mxu0 0
        %453 = vmatprep.subr.bf16.mxu0 0
        %454 = vmatpush1.bf16.msra.mxu0 0
        %455 = vmatprep.subr.bf16.mxu0 0
        %456 = vmatpush1.bf16.msra.mxu0 0
        %457 = vmatprep.subr.bf16.mxu0 0
        %458 = vmatpush1.bf16.msra.mxu0 0
        %459 = vmatprep.subr.bf16.mxu0 0
        %460 = vmatpush1.bf16.msra.mxu0 0
        %461 = vmatprep.mubr.bf16.mxu0 0
        %462 = vmatmul.mubr.bf16.gmra.mrb[0].mxu0 %v365
        %v463 = vpop.f32.mrb[0].mxu0
        %v464 = vadd.f32 0.0, %v463
        %v465 = vpop.f32.mrb[0].mxu0
        %v466 = vpop.f32.mrb[0].mxu0
        %v467 = vadd.f32 0.0, %v466
        %v468 = vpop.f32.mrb[0].mxu0
        %469 = vmatprep.mubr.bf16.mxu0 0
        %470 = vmatmul.mubr.bf16.gmra.mrb[0].mxu0 %v366
        %v471 = vpop.f32.mrb[0].mxu0
        %v472 = vadd.f32 0.0, %v471
        %v473 = vpop.f32.mrb[0].mxu0
        %v474 = vpop.f32.mrb[0].mxu0
        %v475 = vadd.f32 0.0, %v474
        %v476 = vpop.f32.mrb[0].mxu0
        %477 = vmatprep.mubr.bf16.mxu0 0
        %478 = vmatmul.mubr.bf16.gmra.mrb[0].mxu0 %v367
        %v479 = vpop.f32.mrb[0].mxu0
        %v480 = vadd.f32 0.0, %v479
        %v481 = vpop.f32.mrb[0].mxu0
        %v482 = vpop.f32.mrb[0].mxu0
        %v483 = vadd.f32 0.0, %v482
        %v484 = vpop.f32.mrb[0].mxu0
        %485 = vmatprep.mubr.bf16.mxu0 0
        %486 = vmatmul.mubr.bf16.gmra.mrb[0].mxu0 %v368
        %v487 = vpop.f32.mrb[0].mxu0
        %v488 = vadd.f32 0.0, %v487
        %v489 = vpop.f32.mrb[0].mxu0
        %v490 = vpop.f32.mrb[0].mxu0
        %v491 = vadd.f32 0.0, %v490
        %v492 = vpop.f32.mrb[0].mxu0
        %493 = vmatprep.mubr.bf16.mxu0 0
        %494 = vmatmul.mubr.bf16.gmra.mrb[0].mxu0 %v369
        %v495 = vpop.f32.mrb[0].mxu0
        %v496 = vadd.f32 0.0, %v495
        %v497 = vpop.f32.mrb[0].mxu0
        %v498 = vpop.f32.mrb[0].mxu0
        %v499 = vadd.f32 0.0, %v498
        %v500 = vpop.f32.mrb[0].mxu0
        %501 = vmatprep.mubr.bf16.mxu0 0
        %502 = vmatmul.mubr.bf16.gmra.mrb[0].mxu0 %v370
        %v503 = vpop.f32.mrb[0].mxu0
        %v504 = vadd.f32 0.0, %v503
        %v505 = vpop.f32.mrb[0].mxu0
        %v506 = vpop.f32.mrb[0].mxu0
        %v507 = vadd.f32 0.0, %v506
        %v508 = vpop.f32.mrb[0].mxu0
        %509 = vmatprep.mubr.bf16.mxu0 0
        %510 = vmatmul.mubr.bf16.gmra.mrb[0].mxu0 %v371
        %v511 = vpop.f32.mrb[0].mxu0
        %v512 = vadd.f32 0.0, %v511
        %v513 = vpop.f32.mrb[0].mxu0
        %v514 = vpop.f32.mrb[0].mxu0
        %v515 = vadd.f32 0.0, %v514
        %v516 = vpop.f32.mrb[0].mxu0
        %517 = vmatprep.mubr.bf16.mxu0 0
        %518 = vmatmul.mubr.bf16.gmra.mrb[0].mxu0 %v372
        %v519 = vpop.f32.mrb[0].mxu0
        %v520 = vadd.f32 0.0, %v519
        %v521 = vpop.f32.mrb[0].mxu0
        %v522 = vpop.f32.mrb[0].mxu0
        %v523 = vadd.f32 0.0, %v522
        %v524 = vpop.f32.mrb[0].mxu0
        %525 = vdwg.mxu0
        %v528 = vunpack.c.l.b16 %v280
        %v529 = vunpack.c.l.b16 %v281
        %v530 = vpack.c.b16 %v529, %v528
        %v548 = vunpack.c.l.b16 %v300
        %v549 = vunpack.c.l.b16 %v301
        %v550 = vunpack.c.l.b16 %v302
        %v551 = vunpack.c.l.b16 %v303
        %v552 = vunpack.c.l.b16 %v304
        %v553 = vunpack.c.l.b16 %v305
        %v554 = vunpack.c.l.b16 %v306
        %v555 = vunpack.c.l.b16 %v307
        %v556 = vunpack.c.l.b16 %v308
        %v557 = vunpack.c.l.b16 %v309
        %v558 = vunpack.c.l.b16 %v310
        %v559 = vunpack.c.l.b16 %v311
        %v560 = vunpack.c.l.b16 %v312
        %v561 = vunpack.c.l.b16 %v313
        %v562 = vunpack.c.l.b16 %v314
        %v563 = vunpack.c.l.b16 %v315
        %v564 = vpack.c.b16 %v549, %v548
        %v565 = vpack.c.b16 %v551, %v550
        %v566 = vpack.c.b16 %v553, %v552
        %v567 = vpack.c.b16 %v555, %v554
        %v568 = vpack.c.b16 %v557, %v556
        %v569 = vpack.c.b16 %v559, %v558
        %v570 = vpack.c.b16 %v561, %v560
        %v571 = vpack.c.b16 %v563, %v562
        %580 = vmatprep.subr.bf16.mxu0 0
        %581 = vmatpush1.bf16.msra.mxu0 %v564
        %582 = vmatprep.subr.bf16.mxu0 0
        %583 = vmatpush1.bf16.msra.mxu0 %v565
        %584 = vmatprep.subr.bf16.mxu0 0
        %585 = vmatpush1.bf16.msra.mxu0 %v566
        %586 = vmatprep.subr.bf16.mxu0 0
        %587 = vmatpush1.bf16.msra.mxu0 %v567
        %588 = vmatprep.subr.bf16.mxu0 0
        %589 = vmatpush1.bf16.msra.mxu0 %v568
        %590 = vmatprep.subr.bf16.mxu0 0
        %591 = vmatpush1.bf16.msra.mxu0 %v569
        %592 = vmatprep.subr.bf16.mxu0 0
        %593 = vmatpush1.bf16.msra.mxu0 %v570
        %594 = vmatprep.subr.bf16.mxu0 0
        %595 = vmatpush1.bf16.msra.mxu0 %v571
        %596 = vmatprep.subr.bf16.mxu0 0
        %597 = vmatpush1.bf16.msra.mxu0 0
        %598 = vmatprep.subr.bf16.mxu0 0
        %599 = vmatpush1.bf16.msra.mxu0 0
        %600 = vmatprep.subr.bf16.mxu0 0
        %601 = vmatpush1.bf16.msra.mxu0 0
        %602 = vmatprep.subr.bf16.mxu0 0
        %603 = vmatpush1.bf16.msra.mxu0 0
        %604 = vmatprep.subr.bf16.mxu0 0
        %605 = vmatpush1.bf16.msra.mxu0 0
        %606 = vmatprep.subr.bf16.mxu0 0
        %607 = vmatpush1.bf16.msra.mxu0 0
        %608 = vmatprep.subr.bf16.mxu0 0
        %609 = vmatpush1.bf16.msra.mxu0 0
        %610 = vmatprep.subr.bf16.mxu0 0
        %611 = vmatpush1.bf16.msra.mxu0 0
        %612 = vmatprep.mubr.bf16.mxu0 0
        %613 = vmatmul.mubr.bf16.gmra.mrb[0].mxu0 %v530
        %v614 = vpop.f32.mrb[0].mxu0
        %v615 = vadd.f32 %v464, %v614
        %v616 = vpop.f32.mrb[0].mxu0
        %v617 = vpop.f32.mrb[0].mxu0
        %v618 = vadd.f32 %v467, %v617
        %v619 = vpop.f32.mrb[0].mxu0
        %620 = vmatprep.mubr.bf16.mxu0 0
        %621 = vmatmul.mubr.bf16.gmra.mrb[0].mxu0 %v365
        %v622 = vpop.f32.mrb[0].mxu0
        %v623 = vadd.f32 %v472, %v622
        %v624 = vpop.f32.mrb[0].mxu0
        %v625 = vpop.f32.mrb[0].mxu0
        %v626 = vadd.f32 %v475, %v625
        %v627 = vpop.f32.mrb[0].mxu0
        %628 = vmatprep.mubr.bf16.mxu0 0
        %629 = vmatmul.mubr.bf16.gmra.mrb[0].mxu0 %v366
        %v630 = vpop.f32.mrb[0].mxu0
        %v631 = vadd.f32 %v480, %v630
        %v632 = vpop.f32.mrb[0].mxu0
        %v633 = vpop.f32.mrb[0].mxu0
        %v634 = vadd.f32 %v483, %v633
        %v635 = vpop.f32.mrb[0].mxu0
        %636 = vmatprep.mubr.bf16.mxu0 0
        %637 = vmatmul.mubr.bf16.gmra.mrb[0].mxu0 %v367
        %v638 = vpop.f32.mrb[0].mxu0
        %v639 = vadd.f32 %v488, %v638
        %v640 = vpop.f32.mrb[0].mxu0
        %v641 = vpop.f32.mrb[0].mxu0
        %v642 = vadd.f32 %v491, %v641
        %v643 = vpop.f32.mrb[0].mxu0
        %644 = vmatprep.mubr.bf16.mxu0 0
        %645 = vmatmul.mubr.bf16.gmra.mrb[0].mxu0 %v368
        %v646 = vpop.f32.mrb[0].mxu0
        %v647 = vadd.f32 %v496, %v646
        %v648 = vpop.f32.mrb[0].mxu0
        %v649 = vpop.f32.mrb[0].mxu0
        %v650 = vadd.f32 %v499, %v649
        %v651 = vpop.f32.mrb[0].mxu0
        %652 = vmatprep.mubr.bf16.mxu0 0
        %653 = vmatmul.mubr.bf16.gmra.mrb[0].mxu0 %v369
        %v654 = vpop.f32.mrb[0].mxu0
        %v655 = vadd.f32 %v504, %v654
        %v656 = vpop.f32.mrb[0].mxu0
        %v657 = vpop.f32.mrb[0].mxu0
        %v658 = vadd.f32 %v507, %v657
        %v659 = vpop.f32.mrb[0].mxu0
        %660 = vmatprep.mubr.bf16.mxu0 0
        %661 = vmatmul.mubr.bf16.gmra.mrb[0].mxu0 %v370
        %v662 = vpop.f32.mrb[0].mxu0
        %v663 = vadd.f32 %v512, %v662
        %v664 = vpop.f32.mrb[0].mxu0
        %v665 = vpop.f32.mrb[0].mxu0
        %v666 = vadd.f32 %v515, %v665
        %v667 = vpop.f32.mrb[0].mxu0
        %668 = vmatprep.mubr.bf16.mxu0 0
        %669 = vmatmul.mubr.bf16.gmra.mrb[0].mxu0 %v371
        %v670 = vpop.f32.mrb[0].mxu0
        %v671 = vadd.f32 %v520, %v670
        %v672 = vpop.f32.mrb[0].mxu0
        %v673 = vpop.f32.mrb[0].mxu0
        %v674 = vadd.f32 %v523, %v673
        %v675 = vpop.f32.mrb[0].mxu0
        %676 = vdwg.mxu0
        %s677 = scalar_lea.vmem %s271, 384
        %v678 = vld [vmem:[%s677] sm:$0xf]
        %v679 = vld [vmem:[%s677 + $0x4] sm:$0xf]
        %v680 = vld [vmem:[%s677 + $0x8] sm:$0xf]
        %v681 = vld [vmem:[%s677 + $0xc] sm:$0xf]
        %v682 = vld [vmem:[%s677 + $0x10] sm:$0xf]
        %v683 = vld [vmem:[%s677 + $0x14] sm:$0xf]
        %v684 = vld [vmem:[%s677 + $0x18] sm:$0xf]
        %v685 = vld [vmem:[%s677 + $0x1c] sm:$0xf]
        %v686 = vld [vmem:[%s677 + $0x20] sm:$0xf]
        %v687 = vld [vmem:[%s677 + $0x24] sm:$0xf]
        %v688 = vld [vmem:[%s677 + $0x28] sm:$0xf]
        %v689 = vld [vmem:[%s677 + $0x2c] sm:$0xf]
        %v690 = vld [vmem:[%s677 + $0x30] sm:$0xf]
        %v691 = vld [vmem:[%s677 + $0x34] sm:$0xf]
        %v692 = vld [vmem:[%s677 + $0x38] sm:$0xf]
        %v693 = vld [vmem:[%s677 + $0x3c] sm:$0xf]
        %v696 = vunpack.c.l.b16 %v298
        %v697 = vunpack.c.l.b16 %v299
        %v698 = vpack.c.b16 %v697, %v696
        %v716 = vunpack.c.l.b16 %v678
        %v717 = vunpack.c.l.b16 %v679
        %v718 = vunpack.c.l.b16 %v680
        %v719 = vunpack.c.l.b16 %v681
        %v720 = vunpack.c.l.b16 %v682
        %v721 = vunpack.c.l.b16 %v683
        %v722 = vunpack.c.l.b16 %v684
        %v723 = vunpack.c.l.b16 %v685
        %v724 = vunpack.c.l.b16 %v686
        %v725 = vunpack.c.l.b16 %v687
        %v726 = vunpack.c.l.b16 %v688
        %v727 = vunpack.c.l.b16 %v689
        %v728 = vunpack.c.l.b16 %v690
        %v729 = vunpack.c.l.b16 %v691
        %v730 = vunpack.c.l.b16 %v692
        %v731 = vunpack.c.l.b16 %v693
        %v732 = vpack.c.b16 %v717, %v716
        %v733 = vpack.c.b16 %v719, %v718
        %v734 = vpack.c.b16 %v721, %v720
        %v735 = vpack.c.b16 %v723, %v722
        %v736 = vpack.c.b16 %v725, %v724
        %v737 = vpack.c.b16 %v727, %v726
        %v738 = vpack.c.b16 %v729, %v728
        %v739 = vpack.c.b16 %v731, %v730
        %748 = vmatprep.subr.bf16.mxu0 0
        %749 = vmatpush1.bf16.msra.mxu0 %v732
        %750 = vmatprep.subr.bf16.mxu0 0
        %751 = vmatpush1.bf16.msra.mxu0 %v733
        %752 = vmatprep.subr.bf16.mxu0 0
        %753 = vmatpush1.bf16.msra.mxu0 %v734
        %754 = vmatprep.subr.bf16.mxu0 0
        %755 = vmatpush1.bf16.msra.mxu0 %v735
        %756 = vmatprep.subr.bf16.mxu0 0
        %757 = vmatpush1.bf16.msra.mxu0 %v736
        %758 = vmatprep.subr.bf16.mxu0 0
        %759 = vmatpush1.bf16.msra.mxu0 %v737
        %760 = vmatprep.subr.bf16.mxu0 0
        %761 = vmatpush1.bf16.msra.mxu0 %v738
        %762 = vmatprep.subr.bf16.mxu0 0
        %763 = vmatpush1.bf16.msra.mxu0 %v739
        %764 = vmatprep.subr.bf16.mxu0 0
        %765 = vmatpush1.bf16.msra.mxu0 0
        %766 = vmatprep.subr.bf16.mxu0 0
        %767 = vmatpush1.bf16.msra.mxu0 0
        %768 = vmatprep.subr.bf16.mxu0 0
        %769 = vmatpush1.bf16.msra.mxu0 0
        %770 = vmatprep.subr.bf16.mxu0 0
        %771 = vmatpush1.bf16.msra.mxu0 0
        %772 = vmatprep.subr.bf16.mxu0 0
        %773 = vmatpush1.bf16.msra.mxu0 0
        %774 = vmatprep.subr.bf16.mxu0 0
        %775 = vmatpush1.bf16.msra.mxu0 0
        %776 = vmatprep.subr.bf16.mxu0 0
        %777 = vmatpush1.bf16.msra.mxu0 0
        %778 = vmatprep.subr.bf16.mxu0 0
        %779 = vmatpush1.bf16.msra.mxu0 0
        %780 = vmatprep.mubr.bf16.mxu0 0
        %781 = vmatmul.mubr.bf16.gmra.mrb[0].mxu0 %v366
        %v782 = vpop.f32.mrb[0].mxu0
        %v783 = vadd.f32 0.0, %v782
        %v784 = vpop.f32.mrb[0].mxu0
        %v785 = vpop.f32.mrb[0].mxu0
        %v786 = vadd.f32 0.0, %v785
        %v787 = vpop.f32.mrb[0].mxu0
        %788 = vmatprep.mubr.bf16.mxu0 0
        %789 = vmatmul.mubr.bf16.gmra.mrb[0].mxu0 %v367
        %v790 = vpop.f32.mrb[0].mxu0
        %v791 = vadd.f32 0.0, %v790
        %v792 = vpop.f32.mrb[0].mxu0
        %v793 = vpop.f32.mrb[0].mxu0
        %v794 = vadd.f32 0.0, %v793
        %v795 = vpop.f32.mrb[0].mxu0
        %796 = vmatprep.mubr.bf16.mxu0 0
        %797 = vmatmul.mubr.bf16.gmra.mrb[0].mxu0 %v368
        %v798 = vpop.f32.mrb[0].mxu0
        %v799 = vadd.f32 0.0, %v798
        %v800 = vpop.f32.mrb[0].mxu0
        %v801 = vpop.f32.mrb[0].mxu0
        %v802 = vadd.f32 0.0, %v801
        %v803 = vpop.f32.mrb[0].mxu0
        %804 = vmatprep.mubr.bf16.mxu0 0
        %805 = vmatmul.mubr.bf16.gmra.mrb[0].mxu0 %v369
        %v806 = vpop.f32.mrb[0].mxu0
        %v807 = vadd.f32 0.0, %v806
        %v808 = vpop.f32.mrb[0].mxu0
        %v809 = vpop.f32.mrb[0].mxu0
        %v810 = vadd.f32 0.0, %v809
        %v811 = vpop.f32.mrb[0].mxu0
        %812 = vmatprep.mubr.bf16.mxu0 0
        %813 = vmatmul.mubr.bf16.gmra.mrb[0].mxu0 %v370
        %v814 = vpop.f32.mrb[0].mxu0
        %v815 = vadd.f32 0.0, %v814
        %v816 = vpop.f32.mrb[0].mxu0
        %v817 = vpop.f32.mrb[0].mxu0
        %v818 = vadd.f32 0.0, %v817
        %v819 = vpop.f32.mrb[0].mxu0
        %820 = vmatprep.mubr.bf16.mxu0 0
        %821 = vmatmul.mubr.bf16.gmra.mrb[0].mxu0 %v371
        %v822 = vpop.f32.mrb[0].mxu0
        %v823 = vadd.f32 0.0, %v822
        %v824 = vpop.f32.mrb[0].mxu0
        %v825 = vpop.f32.mrb[0].mxu0
        %v826 = vadd.f32 0.0, %v825
        %v827 = vpop.f32.mrb[0].mxu0
        %828 = vmatprep.mubr.bf16.mxu0 0
        %829 = vmatmul.mubr.bf16.gmra.mrb[0].mxu0 %v372
        %v830 = vpop.f32.mrb[0].mxu0
        %v831 = vadd.f32 0.0, %v830
        %v832 = vpop.f32.mrb[0].mxu0
        %v833 = vpop.f32.mrb[0].mxu0
        %v834 = vadd.f32 0.0, %v833
        %v835 = vpop.f32.mrb[0].mxu0
        %836 = vmatprep.mubr.bf16.mxu0 0
        %837 = vmatmul.mubr.bf16.gmra.mrb[0].mxu0 %v698
        %v838 = vpop.f32.mrb[0].mxu0
        %v839 = vadd.f32 0.0, %v838
        %v840 = vpop.f32.mrb[0].mxu0
        %v841 = vpop.f32.mrb[0].mxu0
        %v842 = vadd.f32 0.0, %v841
        %v843 = vpop.f32.mrb[0].mxu0
        %844 = vdwg.mxu0
        %v845 = vadd.f32 %v615, %v783
        %v846 = vadd.f32 %v618, %v786
        %v847 = vadd.f32 %v623, %v791
        %v848 = vadd.f32 %v626, %v794
        %v849 = vadd.f32 %v631, %v799
        %v850 = vadd.f32 %v634, %v802
        %v851 = vadd.f32 %v639, %v807
        %v852 = vadd.f32 %v642, %v810
        %v853 = vadd.f32 %v647, %v815
        %v854 = vadd.f32 %v650, %v818
        %v855 = vadd.f32 %v655, %v823
        %v856 = vadd.f32 %v658, %v826
        %v857 = vadd.f32 %v663, %v831
        %v858 = vadd.f32 %v666, %v834
        %v859 = vadd.f32 %v671, %v839
        %v860 = vadd.f32 %v674, %v842
        %v861 = vld [vmem:[%s267] sm:$0xf]
        %v862 = vld [vmem:[%s267 + $0x4] sm:$0xf]
        %v863 = vld [vmem:[%s267 + $0x8] sm:$0x1]
        %v864 = vld [vmem:[%s267 + $0xc] sm:$0xf]
        %v865 = vld [vmem:[%s267 + $0x10] sm:$0xf]
        %v866 = vld [vmem:[%s267 + $0x14] sm:$0x1]
        %v867 = vld [vmem:[%s267 + $0x18] sm:$0xf]
        %v868 = vld [vmem:[%s267 + $0x1c] sm:$0xf]
        %v869 = vld [vmem:[%s267 + $0x20] sm:$0x1]
        %v870 = vld [vmem:[%s267 + $0x24] sm:$0xf]
        %v871 = vld [vmem:[%s267 + $0x28] sm:$0xf]
        %v872 = vld [vmem:[%s267 + $0x2c] sm:$0x1]
        %v873 = vld [vmem:[%s267 + $0x30] sm:$0xf]
        %v874 = vld [vmem:[%s267 + $0x34] sm:$0xf]
        %v875 = vld [vmem:[%s267 + $0x38] sm:$0x1]
        %v876 = vld [vmem:[%s267 + $0x3c] sm:$0xf]
        %v877 = vld [vmem:[%s267 + $0x40] sm:$0xf]
        %v878 = vld [vmem:[%s267 + $0x44] sm:$0x1]
        %v879 = vld [vmem:[%s267 + $0x48] sm:$0xf]
        %v880 = vld [vmem:[%s267 + $0x4c] sm:$0xf]
        %v881 = vld [vmem:[%s267 + $0x50] sm:$0x1]
        %v882 = vld [vmem:[%s267 + $0x54] sm:$0xf]
        %v883 = vld [vmem:[%s267 + $0x58] sm:$0xf]
        %v884 = vld [vmem:[%s267 + $0x5c] sm:$0x1]
        %v885 = vld [vmem:[%s267 + $0x60] sm:$0xf]
        %v886 = vld [vmem:[%s267 + $0x64] sm:$0xf]
        %v887 = vld [vmem:[%s267 + $0x68] sm:$0x1]
        %v888 = vld [vmem:[%s267 + $0x6c] sm:$0xf]
        %v889 = vld [vmem:[%s267 + $0x70] sm:$0xf]
        %v890 = vld [vmem:[%s267 + $0x74] sm:$0x1]
        %vm891 = vsmask.f32 3328
        %vm892 = vsmask.f32 7440
        %vm893 = vmor %vm891, %vm892
        %v895 = vshrl.u32 %v861, 16
        %v897 = vrot.slane %v895, 4
        %v898 = vshll.u32 %v861, 16
        %v900 = vrot.slane %v898, 5
        %v901 = vor.u32 %v897, %v900
        %v902 = vrot.slane %v901, 4
        %v904 = vshll.u32 %v862, 16
        %v906 = vrot.slane %v904, 5
        %v907 = vsel %vm893, %v902, %v906
        %v908 = vshrl.u32 %v862, 16
        %v910 = vrot.slane %v908, 4
        %v911 = vor.u32 %v910, %v906
        %v912 = vrot.slane %v911, 4
        %v914 = vshll.u32 %v863, 16
        %v916 = vrot.slane %v914, 5
        %v917 = vsel %vm893, %v912, %v916
        %v919 = vshrl.u32 %v864, 16
        %v921 = vrot.slane %v919, 4
        %v922 = vshll.u32 %v864, 16
        %v924 = vrot.slane %v922, 5
        %v925 = vor.u32 %v921, %v924
        %v926 = vrot.slane %v925, 4
        %v928 = vshll.u32 %v865, 16
        %v930 = vrot.slane %v928, 5
        %v931 = vsel %vm893, %v926, %v930
        %v932 = vshrl.u32 %v865, 16
        %v934 = vrot.slane %v932, 4
        %v935 = vor.u32 %v934, %v930
        %v936 = vrot.slane %v935, 4
        %v938 = vshll.u32 %v866, 16
        %v940 = vrot.slane %v938, 5
        %v941 = vsel %vm893, %v936, %v940
        %v943 = vshrl.u32 %v867, 16
        %v945 = vrot.slane %v943, 4
        %v946 = vshll.u32 %v867, 16
        %v948 = vrot.slane %v946, 5
        %v949 = vor.u32 %v945, %v948
        %v950 = vrot.slane %v949, 4
        %v952 = vshll.u32 %v868, 16
        %v954 = vrot.slane %v952, 5
        %v955 = vsel %vm893, %v950, %v954
        %v956 = vshrl.u32 %v868, 16
        %v958 = vrot.slane %v956, 4
        %v959 = vor.u32 %v958, %v954
        %v960 = vrot.slane %v959, 4
        %v962 = vshll.u32 %v869, 16
        %v964 = vrot.slane %v962, 5
        %v965 = vsel %vm893, %v960, %v964
        %v967 = vshrl.u32 %v870, 16
        %v969 = vrot.slane %v967, 4
        %v970 = vshll.u32 %v870, 16
        %v972 = vrot.slane %v970, 5
        %v973 = vor.u32 %v969, %v972
        %v974 = vrot.slane %v973, 4
        %v976 = vshll.u32 %v871, 16
        %v978 = vrot.slane %v976, 5
        %v979 = vsel %vm893, %v974, %v978
        %v980 = vshrl.u32 %v871, 16
        %v982 = vrot.slane %v980, 4
        %v983 = vor.u32 %v982, %v978
        %v984 = vrot.slane %v983, 4
        %v986 = vshll.u32 %v872, 16
        %v988 = vrot.slane %v986, 5
        %v989 = vsel %vm893, %v984, %v988
        %v991 = vshrl.u32 %v873, 16
        %v993 = vrot.slane %v991, 4
        %v994 = vshll.u32 %v873, 16
        %v996 = vrot.slane %v994, 5
        %v997 = vor.u32 %v993, %v996
        %v998 = vrot.slane %v997, 4
        %v1000 = vshll.u32 %v874, 16
        %v1002 = vrot.slane %v1000, 5
        %v1003 = vsel %vm893, %v998, %v1002
        %v1004 = vshrl.u32 %v874, 16
        %v1006 = vrot.slane %v1004, 4
        %v1007 = vor.u32 %v1006, %v1002
        %v1008 = vrot.slane %v1007, 4
        %v1010 = vshll.u32 %v875, 16
        %v1012 = vrot.slane %v1010, 5
        %v1013 = vsel %vm893, %v1008, %v1012
        %v1015 = vshrl.u32 %v876, 16
        %v1017 = vrot.slane %v1015, 4
        %v1018 = vshll.u32 %v876, 16
        %v1020 = vrot.slane %v1018, 5
        %v1021 = vor.u32 %v1017, %v1020
        %v1022 = vrot.slane %v1021, 4
        %v1024 = vshll.u32 %v877, 16
        %v1026 = vrot.slane %v1024, 5
        %v1027 = vsel %vm893, %v1022, %v1026
        %v1028 = vshrl.u32 %v877, 16
        %v1030 = vrot.slane %v1028, 4
        %v1031 = vor.u32 %v1030, %v1026
        %v1032 = vrot.slane %v1031, 4
        %v1034 = vshll.u32 %v878, 16
        %v1036 = vrot.slane %v1034, 5
        %v1037 = vsel %vm893, %v1032, %v1036
        %v1039 = vshrl.u32 %v879, 16
        %v1041 = vrot.slane %v1039, 4
        %v1042 = vshll.u32 %v879, 16
        %v1044 = vrot.slane %v1042, 5
        %v1045 = vor.u32 %v1041, %v1044
        %v1046 = vrot.slane %v1045, 4
        %v1048 = vshll.u32 %v880, 16
        %v1050 = vrot.slane %v1048, 5
        %v1051 = vsel %vm893, %v1046, %v1050
        %v1052 = vshrl.u32 %v880, 16
        %v1054 = vrot.slane %v1052, 4
        %v1055 = vor.u32 %v1054, %v1050
        %v1056 = vrot.slane %v1055, 4
        %v1058 = vshll.u32 %v881, 16
        %v1060 = vrot.slane %v1058, 5
        %v1061 = vsel %vm893, %v1056, %v1060
        %v1063 = vshrl.u32 %v882, 16
        %v1065 = vrot.slane %v1063, 4
        %v1066 = vshll.u32 %v882, 16
        %v1068 = vrot.slane %v1066, 5
        %v1069 = vor.u32 %v1065, %v1068
        %v1070 = vrot.slane %v1069, 4
        %v1072 = vshll.u32 %v883, 16
        %v1074 = vrot.slane %v1072, 5
        %v1075 = vsel %vm893, %v1070, %v1074
        %v1076 = vshrl.u32 %v883, 16
        %v1078 = vrot.slane %v1076, 4
        %v1079 = vor.u32 %v1078, %v1074
        %v1080 = vrot.slane %v1079, 4
        %v1082 = vshll.u32 %v884, 16
        %v1084 = vrot.slane %v1082, 5
        %v1085 = vsel %vm893, %v1080, %v1084
        %s1086 = scalar_lea.vmem %s271, 64
        %v1087 = vld [vmem:[%s1086] sm:$0xf]
        %v1088 = vld [vmem:[%s1086 + $0x4] sm:$0xf]
        %v1089 = vld [vmem:[%s1086 + $0x8] sm:$0xf]
        %v1090 = vld [vmem:[%s1086 + $0xc] sm:$0xf]
        %v1091 = vld [vmem:[%s1086 + $0x10] sm:$0xf]
        %v1092 = vld [vmem:[%s1086 + $0x14] sm:$0xf]
        %v1093 = vld [vmem:[%s1086 + $0x18] sm:$0xf]
        %v1094 = vld [vmem:[%s1086 + $0x1c] sm:$0xf]
        %v1095 = vld [vmem:[%s1086 + $0x20] sm:$0xf]
        %v1096 = vld [vmem:[%s1086 + $0x24] sm:$0xf]
        %v1097 = vld [vmem:[%s1086 + $0x28] sm:$0xf]
        %v1098 = vld [vmem:[%s1086 + $0x2c] sm:$0xf]
        %v1099 = vld [vmem:[%s1086 + $0x30] sm:$0xf]
        %v1100 = vld [vmem:[%s1086 + $0x34] sm:$0xf]
        %v1101 = vld [vmem:[%s1086 + $0x38] sm:$0xf]
        %v1102 = vld [vmem:[%s1086 + $0x3c] sm:$0xf]
        %v1103 = vunpack.c.l.b16 %v907
        %v1104 = vunpack.c.l.b16 %v917
        %v1105 = vunpack.c.l.b16 %v931
        %v1106 = vunpack.c.l.b16 %v941
        %v1107 = vunpack.c.l.b16 %v955
        %v1108 = vunpack.c.l.b16 %v965
        %v1109 = vunpack.c.l.b16 %v979
        %v1110 = vunpack.c.l.b16 %v989
        %v1111 = vunpack.c.l.b16 %v1003
        %v1112 = vunpack.c.l.b16 %v1013
        %v1113 = vunpack.c.l.b16 %v1027
        %v1114 = vunpack.c.l.b16 %v1037
        %v1115 = vunpack.c.l.b16 %v1051
        %v1116 = vunpack.c.l.b16 %v1061
        %v1117 = vunpack.c.l.b16 %v1075
        %v1118 = vunpack.c.l.b16 %v1085
        %v1119 = vpack.c.b16 %v1104, %v1103
        %v1120 = vpack.c.b16 %v1106, %v1105
        %v1121 = vpack.c.b16 %v1108, %v1107
        %v1122 = vpack.c.b16 %v1110, %v1109
        %v1123 = vpack.c.b16 %v1112, %v1111
        %v1124 = vpack.c.b16 %v1114, %v1113
        %v1125 = vpack.c.b16 %v1116, %v1115
        %v1126 = vpack.c.b16 %v1118, %v1117
        %v1151 = vunpack.c.l.b16 %v1087
        %v1152 = vunpack.c.l.b16 %v1088
        %v1153 = vunpack.c.l.b16 %v1089
        %v1154 = vunpack.c.l.b16 %v1090
        %v1155 = vunpack.c.l.b16 %v1091
        %v1156 = vunpack.c.l.b16 %v1092
        %v1157 = vunpack.c.l.b16 %v1093
        %v1158 = vunpack.c.l.b16 %v1094
        %v1159 = vunpack.c.l.b16 %v1095
        %v1160 = vunpack.c.l.b16 %v1096
        %v1161 = vunpack.c.l.b16 %v1097
        %v1162 = vunpack.c.l.b16 %v1098
        %v1163 = vunpack.c.l.b16 %v1099
        %v1164 = vunpack.c.l.b16 %v1100
        %v1165 = vunpack.c.l.b16 %v1101
        %v1166 = vunpack.c.l.b16 %v1102
        %v1167 = vpack.c.b16 %v1152, %v1151
        %v1168 = vpack.c.b16 %v1154, %v1153
        %v1169 = vpack.c.b16 %v1156, %v1155
        %v1170 = vpack.c.b16 %v1158, %v1157
        %v1171 = vpack.c.b16 %v1160, %v1159
        %v1172 = vpack.c.b16 %v1162, %v1161
        %v1173 = vpack.c.b16 %v1164, %v1163
        %v1174 = vpack.c.b16 %v1166, %v1165
        %1183 = vmatprep.subr.bf16.mxu0 0
        %1184 = vmatpush1.bf16.msra.mxu0 %v1167
        %1185 = vmatprep.subr.bf16.mxu0 0
        %1186 = vmatpush1.bf16.msra.mxu0 %v1168
        %1187 = vmatprep.subr.bf16.mxu0 0
        %1188 = vmatpush1.bf16.msra.mxu0 %v1169
        %1189 = vmatprep.subr.bf16.mxu0 0
        %1190 = vmatpush1.bf16.msra.mxu0 %v1170
        %1191 = vmatprep.subr.bf16.mxu0 0
        %1192 = vmatpush1.bf16.msra.mxu0 %v1171
        %1193 = vmatprep.subr.bf16.mxu0 0
        %1194 = vmatpush1.bf16.msra.mxu0 %v1172
        %1195 = vmatprep.subr.bf16.mxu0 0
        %1196 = vmatpush1.bf16.msra.mxu0 %v1173
        %1197 = vmatprep.subr.bf16.mxu0 0
        %1198 = vmatpush1.bf16.msra.mxu0 %v1174
        %1199 = vmatprep.subr.bf16.mxu0 0
        %1200 = vmatpush1.bf16.msra.mxu0 0
        %1201 = vmatprep.subr.bf16.mxu0 0
        %1202 = vmatpush1.bf16.msra.mxu0 0
        %1203 = vmatprep.subr.bf16.mxu0 0
        %1204 = vmatpush1.bf16.msra.mxu0 0
        %1205 = vmatprep.subr.bf16.mxu0 0
        %1206 = vmatpush1.bf16.msra.mxu0 0
        %1207 = vmatprep.subr.bf16.mxu0 0
        %1208 = vmatpush1.bf16.msra.mxu0 0
        %1209 = vmatprep.subr.bf16.mxu0 0
        %1210 = vmatpush1.bf16.msra.mxu0 0
        %1211 = vmatprep.subr.bf16.mxu0 0
        %1212 = vmatpush1.bf16.msra.mxu0 0
        %1213 = vmatprep.subr.bf16.mxu0 0
        %1214 = vmatpush1.bf16.msra.mxu0 0
        %1215 = vmatprep.mubr.bf16.mxu0 0
        %1216 = vmatmul.mubr.bf16.gmra.mrb[0].mxu0 %v1119
        %v1217 = vpop.f32.mrb[0].mxu0
        %v1218 = vadd.f32 0.0, %v1217
        %v1219 = vpop.f32.mrb[0].mxu0
        %v1220 = vpop.f32.mrb[0].mxu0
        %v1221 = vadd.f32 0.0, %v1220
        %v1222 = vpop.f32.mrb[0].mxu0
        %1223 = vmatprep.mubr.bf16.mxu0 0
        %1224 = vmatmul.mubr.bf16.gmra.mrb[0].mxu0 %v1120
        %v1225 = vpop.f32.mrb[0].mxu0
        %v1226 = vadd.f32 0.0, %v1225
        %v1227 = vpop.f32.mrb[0].mxu0
        %v1228 = vpop.f32.mrb[0].mxu0
        %v1229 = vadd.f32 0.0, %v1228
        %v1230 = vpop.f32.mrb[0].mxu0
        %1231 = vmatprep.mubr.bf16.mxu0 0
        %1232 = vmatmul.mubr.bf16.gmra.mrb[0].mxu0 %v1121
        %v1233 = vpop.f32.mrb[0].mxu0
        %v1234 = vadd.f32 0.0, %v1233
        %v1235 = vpop.f32.mrb[0].mxu0
        %v1236 = vpop.f32.mrb[0].mxu0
        %v1237 = vadd.f32 0.0, %v1236
        %v1238 = vpop.f32.mrb[0].mxu0
        %1239 = vmatprep.mubr.bf16.mxu0 0
        %1240 = vmatmul.mubr.bf16.gmra.mrb[0].mxu0 %v1122
        %v1241 = vpop.f32.mrb[0].mxu0
        %v1242 = vadd.f32 0.0, %v1241
        %v1243 = vpop.f32.mrb[0].mxu0
        %v1244 = vpop.f32.mrb[0].mxu0
        %v1245 = vadd.f32 0.0, %v1244
        %v1246 = vpop.f32.mrb[0].mxu0
        %1247 = vmatprep.mubr.bf16.mxu0 0
        %1248 = vmatmul.mubr.bf16.gmra.mrb[0].mxu0 %v1123
        %v1249 = vpop.f32.mrb[0].mxu0
        %v1250 = vadd.f32 0.0, %v1249
        %v1251 = vpop.f32.mrb[0].mxu0
        %v1252 = vpop.f32.mrb[0].mxu0
        %v1253 = vadd.f32 0.0, %v1252
        %v1254 = vpop.f32.mrb[0].mxu0
        %1255 = vmatprep.mubr.bf16.mxu0 0
        %1256 = vmatmul.mubr.bf16.gmra.mrb[0].mxu0 %v1124
        %v1257 = vpop.f32.mrb[0].mxu0
        %v1258 = vadd.f32 0.0, %v1257
        %v1259 = vpop.f32.mrb[0].mxu0
        %v1260 = vpop.f32.mrb[0].mxu0
        %v1261 = vadd.f32 0.0, %v1260
        %v1262 = vpop.f32.mrb[0].mxu0
        %1263 = vmatprep.mubr.bf16.mxu0 0
        %1264 = vmatmul.mubr.bf16.gmra.mrb[0].mxu0 %v1125
        %v1265 = vpop.f32.mrb[0].mxu0
        %v1266 = vadd.f32 0.0, %v1265
        %v1267 = vpop.f32.mrb[0].mxu0
        %v1268 = vpop.f32.mrb[0].mxu0
        %v1269 = vadd.f32 0.0, %v1268
        %v1270 = vpop.f32.mrb[0].mxu0
        %1271 = vmatprep.mubr.bf16.mxu0 0
        %1272 = vmatmul.mubr.bf16.gmra.mrb[0].mxu0 %v1126
        %v1273 = vpop.f32.mrb[0].mxu0
        %v1274 = vadd.f32 0.0, %v1273
        %v1275 = vpop.f32.mrb[0].mxu0
        %v1276 = vpop.f32.mrb[0].mxu0
        %v1277 = vadd.f32 0.0, %v1276
        %v1278 = vpop.f32.mrb[0].mxu0
        %1279 = vdwg.mxu0
        %v1280 = vadd.f32 %v845, %v1218
        %v1281 = vadd.f32 %v846, %v1221
        %v1282 = vadd.f32 %v847, %v1226
        %v1283 = vadd.f32 %v848, %v1229
        %v1284 = vadd.f32 %v849, %v1234
        %v1285 = vadd.f32 %v850, %v1237
        %v1286 = vadd.f32 %v851, %v1242
        %v1287 = vadd.f32 %v852, %v1245
        %v1288 = vadd.f32 %v853, %v1250
        %v1289 = vadd.f32 %v854, %v1253
        %v1290 = vadd.f32 %v855, %v1258
        %v1291 = vadd.f32 %v856, %v1261
        %v1292 = vadd.f32 %v857, %v1266
        %v1293 = vadd.f32 %v858, %v1269
        %v1294 = vadd.f32 %v859, %v1274
        %v1295 = vadd.f32 %v860, %v1277
        %v1297 = vshrl.u32 %v885, 16
        %v1299 = vrot.slane %v1297, 4
        %v1300 = vshll.u32 %v885, 16
        %v1302 = vrot.slane %v1300, 5
        %v1303 = vor.u32 %v1299, %v1302
        %v1304 = vrot.slane %v1303, 4
        %v1306 = vshll.u32 %v886, 16
        %v1308 = vrot.slane %v1306, 5
        %v1309 = vsel %vm893, %v1304, %v1308
        %v1310 = vshrl.u32 %v886, 16
        %v1312 = vrot.slane %v1310, 4
        %v1313 = vor.u32 %v1312, %v1308
        %v1314 = vrot.slane %v1313, 4
        %v1316 = vshll.u32 %v887, 16
        %v1318 = vrot.slane %v1316, 5
        %v1319 = vsel %vm893, %v1314, %v1318
        %s1320 = scalar_lea.vmem %s271, 256
        %v1321 = vld [vmem:[%s1320] sm:$0xf]
        %v1322 = vld [vmem:[%s1320 + $0x4] sm:$0xf]
        %v1323 = vld [vmem:[%s1320 + $0x8] sm:$0xf]
        %v1324 = vld [vmem:[%s1320 + $0xc] sm:$0xf]
        %v1325 = vld [vmem:[%s1320 + $0x10] sm:$0xf]
        %v1326 = vld [vmem:[%s1320 + $0x14] sm:$0xf]
        %v1327 = vld [vmem:[%s1320 + $0x18] sm:$0xf]
        %v1328 = vld [vmem:[%s1320 + $0x1c] sm:$0xf]
        %v1329 = vld [vmem:[%s1320 + $0x20] sm:$0xf]
        %v1330 = vld [vmem:[%s1320 + $0x24] sm:$0xf]
        %v1331 = vld [vmem:[%s1320 + $0x28] sm:$0xf]
        %v1332 = vld [vmem:[%s1320 + $0x2c] sm:$0xf]
        %v1333 = vld [vmem:[%s1320 + $0x30] sm:$0xf]
        %v1334 = vld [vmem:[%s1320 + $0x34] sm:$0xf]
        %v1335 = vld [vmem:[%s1320 + $0x38] sm:$0xf]
        %v1336 = vld [vmem:[%s1320 + $0x3c] sm:$0xf]
        %v1337 = vunpack.c.l.b16 %v1309
        %v1338 = vunpack.c.l.b16 %v1319
        %v1339 = vpack.c.b16 %v1338, %v1337
        %v1357 = vunpack.c.l.b16 %v1321
        %v1358 = vunpack.c.l.b16 %v1322
        %v1359 = vunpack.c.l.b16 %v1323
        %v1360 = vunpack.c.l.b16 %v1324
        %v1361 = vunpack.c.l.b16 %v1325
        %v1362 = vunpack.c.l.b16 %v1326
        %v1363 = vunpack.c.l.b16 %v1327
        %v1364 = vunpack.c.l.b16 %v1328
        %v1365 = vunpack.c.l.b16 %v1329
        %v1366 = vunpack.c.l.b16 %v1330
        %v1367 = vunpack.c.l.b16 %v1331
        %v1368 = vunpack.c.l.b16 %v1332
        %v1369 = vunpack.c.l.b16 %v1333
        %v1370 = vunpack.c.l.b16 %v1334
        %v1371 = vunpack.c.l.b16 %v1335
        %v1372 = vunpack.c.l.b16 %v1336
        %v1373 = vpack.c.b16 %v1358, %v1357
        %v1374 = vpack.c.b16 %v1360, %v1359
        %v1375 = vpack.c.b16 %v1362, %v1361
        %v1376 = vpack.c.b16 %v1364, %v1363
        %v1377 = vpack.c.b16 %v1366, %v1365
        %v1378 = vpack.c.b16 %v1368, %v1367
        %v1379 = vpack.c.b16 %v1370, %v1369
        %v1380 = vpack.c.b16 %v1372, %v1371
        %1389 = vmatprep.subr.bf16.mxu0 0
        %1390 = vmatpush1.bf16.msra.mxu0 %v1373
        %1391 = vmatprep.subr.bf16.mxu0 0
        %1392 = vmatpush1.bf16.msra.mxu0 %v1374
        %1393 = vmatprep.subr.bf16.mxu0 0
        %1394 = vmatpush1.bf16.msra.mxu0 %v1375
        %1395 = vmatprep.subr.bf16.mxu0 0
        %1396 = vmatpush1.bf16.msra.mxu0 %v1376
        %1397 = vmatprep.subr.bf16.mxu0 0
        %1398 = vmatpush1.bf16.msra.mxu0 %v1377
        %1399 = vmatprep.subr.bf16.mxu0 0
        %1400 = vmatpush1.bf16.msra.mxu0 %v1378
        %1401 = vmatprep.subr.bf16.mxu0 0
        %1402 = vmatpush1.bf16.msra.mxu0 %v1379
        %1403 = vmatprep.subr.bf16.mxu0 0
        %1404 = vmatpush1.bf16.msra.mxu0 %v1380
        %1405 = vmatprep.subr.bf16.mxu0 0
        %1406 = vmatpush1.bf16.msra.mxu0 0
        %1407 = vmatprep.subr.bf16.mxu0 0
        %1408 = vmatpush1.bf16.msra.mxu0 0
        %1409 = vmatprep.subr.bf16.mxu0 0
        %1410 = vmatpush1.bf16.msra.mxu0 0
        %1411 = vmatprep.subr.bf16.mxu0 0
        %1412 = vmatpush1.bf16.msra.mxu0 0
        %1413 = vmatprep.subr.bf16.mxu0 0
        %1414 = vmatpush1.bf16.msra.mxu0 0
        %1415 = vmatprep.subr.bf16.mxu0 0
        %1416 = vmatpush1.bf16.msra.mxu0 0
        %1417 = vmatprep.subr.bf16.mxu0 0
        %1418 = vmatpush1.bf16.msra.mxu0 0
        %1419 = vmatprep.subr.bf16.mxu0 0
        %1420 = vmatpush1.bf16.msra.mxu0 0
        %1421 = vmatprep.mubr.bf16.mxu0 0
        %1422 = vmatmul.mubr.bf16.gmra.mrb[0].mxu0 %v1120
        %v1423 = vpop.f32.mrb[0].mxu0
        %v1424 = vadd.f32 0.0, %v1423
        %v1425 = vpop.f32.mrb[0].mxu0
        %v1426 = vpop.f32.mrb[0].mxu0
        %v1427 = vadd.f32 0.0, %v1426
        %v1428 = vpop.f32.mrb[0].mxu0
        %1429 = vmatprep.mubr.bf16.mxu0 0
        %1430 = vmatmul.mubr.bf16.gmra.mrb[0].mxu0 %v1121
        %v1431 = vpop.f32.mrb[0].mxu0
        %v1432 = vadd.f32 0.0, %v1431
        %v1433 = vpop.f32.mrb[0].mxu0
        %v1434 = vpop.f32.mrb[0].mxu0
        %v1435 = vadd.f32 0.0, %v1434
        %v1436 = vpop.f32.mrb[0].mxu0
        %1437 = vmatprep.mubr.bf16.mxu0 0
        %1438 = vmatmul.mubr.bf16.gmra.mrb[0].mxu0 %v1122
        %v1439 = vpop.f32.mrb[0].mxu0
        %v1440 = vadd.f32 0.0, %v1439
        %v1441 = vpop.f32.mrb[0].mxu0
        %v1442 = vpop.f32.mrb[0].mxu0
        %v1443 = vadd.f32 0.0, %v1442
        %v1444 = vpop.f32.mrb[0].mxu0
        %1445 = vmatprep.mubr.bf16.mxu0 0
        %1446 = vmatmul.mubr.bf16.gmra.mrb[0].mxu0 %v1123
        %v1447 = vpop.f32.mrb[0].mxu0
        %v1448 = vadd.f32 0.0, %v1447
        %v1449 = vpop.f32.mrb[0].mxu0
        %v1450 = vpop.f32.mrb[0].mxu0
        %v1451 = vadd.f32 0.0, %v1450
        %v1452 = vpop.f32.mrb[0].mxu0
        %1453 = vmatprep.mubr.bf16.mxu0 0
        %1454 = vmatmul.mubr.bf16.gmra.mrb[0].mxu0 %v1124
        %v1455 = vpop.f32.mrb[0].mxu0
        %v1456 = vadd.f32 0.0, %v1455
        %v1457 = vpop.f32.mrb[0].mxu0
        %v1458 = vpop.f32.mrb[0].mxu0
        %v1459 = vadd.f32 0.0, %v1458
        %v1460 = vpop.f32.mrb[0].mxu0
        %1461 = vmatprep.mubr.bf16.mxu0 0
        %1462 = vmatmul.mubr.bf16.gmra.mrb[0].mxu0 %v1125
        %v1463 = vpop.f32.mrb[0].mxu0
        %v1464 = vadd.f32 0.0, %v1463
        %v1465 = vpop.f32.mrb[0].mxu0
        %v1466 = vpop.f32.mrb[0].mxu0
        %v1467 = vadd.f32 0.0, %v1466
        %v1468 = vpop.f32.mrb[0].mxu0
        %1469 = vmatprep.mubr.bf16.mxu0 0
        %1470 = vmatmul.mubr.bf16.gmra.mrb[0].mxu0 %v1126
        %v1471 = vpop.f32.mrb[0].mxu0
        %v1472 = vadd.f32 0.0, %v1471
        %v1473 = vpop.f32.mrb[0].mxu0
        %v1474 = vpop.f32.mrb[0].mxu0
        %v1475 = vadd.f32 0.0, %v1474
        %v1476 = vpop.f32.mrb[0].mxu0
        %1477 = vmatprep.mubr.bf16.mxu0 0
        %1478 = vmatmul.mubr.bf16.gmra.mrb[0].mxu0 %v1339
        %v1479 = vpop.f32.mrb[0].mxu0
        %v1480 = vadd.f32 0.0, %v1479
        %v1481 = vpop.f32.mrb[0].mxu0
        %v1482 = vpop.f32.mrb[0].mxu0
        %v1483 = vadd.f32 0.0, %v1482
        %v1484 = vpop.f32.mrb[0].mxu0
        %1485 = vdwg.mxu0
        %v1486 = vadd.f32 %v1280, %v1424
        %v1487 = vadd.f32 %v1281, %v1427
        %v1488 = vadd.f32 %v1282, %v1432
        %v1489 = vadd.f32 %v1283, %v1435
        %v1490 = vadd.f32 %v1284, %v1440
        %v1491 = vadd.f32 %v1285, %v1443
        %v1492 = vadd.f32 %v1286, %v1448
        %v1493 = vadd.f32 %v1287, %v1451
        %v1494 = vadd.f32 %v1288, %v1456
        %v1495 = vadd.f32 %v1289, %v1459
        %v1496 = vadd.f32 %v1290, %v1464
        %v1497 = vadd.f32 %v1291, %v1467
        %v1498 = vadd.f32 %v1292, %v1472
        %v1499 = vadd.f32 %v1293, %v1475
        %v1500 = vadd.f32 %v1294, %v1480
        %v1501 = vadd.f32 %v1295, %v1483
        %v1503 = vshrl.u32 %v888, 16
        %v1505 = vrot.slane %v1503, 4
        %v1506 = vshll.u32 %v888, 16
        %v1508 = vrot.slane %v1506, 5
        %v1509 = vor.u32 %v1505, %v1508
        %v1510 = vrot.slane %v1509, 4
        %v1512 = vshll.u32 %v889, 16
        %v1514 = vrot.slane %v1512, 5
        %v1515 = vsel %vm893, %v1510, %v1514
        %v1516 = vshrl.u32 %v889, 16
        %v1518 = vrot.slane %v1516, 4
        %v1519 = vor.u32 %v1518, %v1514
        %v1520 = vrot.slane %v1519, 4
        %v1522 = vshll.u32 %v890, 16
        %v1524 = vrot.slane %v1522, 5
        %v1525 = vsel %vm893, %v1520, %v1524
        %s1526 = scalar_lea.vmem %s271, 448
        %v1527 = vld [vmem:[%s1526] sm:$0xf]
        %v1528 = vld [vmem:[%s1526 + $0x4] sm:$0xf]
        %v1529 = vld [vmem:[%s1526 + $0x8] sm:$0xf]
        %v1530 = vld [vmem:[%s1526 + $0xc] sm:$0xf]
        %v1531 = vld [vmem:[%s1526 + $0x10] sm:$0xf]
        %v1532 = vld [vmem:[%s1526 + $0x14] sm:$0xf]
        %v1533 = vld [vmem:[%s1526 + $0x18] sm:$0xf]
        %v1534 = vld [vmem:[%s1526 + $0x1c] sm:$0xf]
        %v1535 = vld [vmem:[%s1526 + $0x20] sm:$0xf]
        %v1536 = vld [vmem:[%s1526 + $0x24] sm:$0xf]
        %v1537 = vld [vmem:[%s1526 + $0x28] sm:$0xf]
        %v1538 = vld [vmem:[%s1526 + $0x2c] sm:$0xf]
        %v1539 = vld [vmem:[%s1526 + $0x30] sm:$0xf]
        %v1540 = vld [vmem:[%s1526 + $0x34] sm:$0xf]
        %v1541 = vld [vmem:[%s1526 + $0x38] sm:$0xf]
        %v1542 = vld [vmem:[%s1526 + $0x3c] sm:$0xf]
        %v1543 = vunpack.c.l.b16 %v1515
        %v1544 = vunpack.c.l.b16 %v1525
        %v1545 = vpack.c.b16 %v1544, %v1543
        %v1563 = vunpack.c.l.b16 %v1527
        %v1564 = vunpack.c.l.b16 %v1528
        %v1565 = vunpack.c.l.b16 %v1529
        %v1566 = vunpack.c.l.b16 %v1530
        %v1567 = vunpack.c.l.b16 %v1531
        %v1568 = vunpack.c.l.b16 %v1532
        %v1569 = vunpack.c.l.b16 %v1533
        %v1570 = vunpack.c.l.b16 %v1534
        %v1571 = vunpack.c.l.b16 %v1535
        %v1572 = vunpack.c.l.b16 %v1536
        %v1573 = vunpack.c.l.b16 %v1537
        %v1574 = vunpack.c.l.b16 %v1538
        %v1575 = vunpack.c.l.b16 %v1539
        %v1576 = vunpack.c.l.b16 %v1540
        %v1577 = vunpack.c.l.b16 %v1541
        %v1578 = vunpack.c.l.b16 %v1542
        %v1579 = vpack.c.b16 %v1564, %v1563
        %v1580 = vpack.c.b16 %v1566, %v1565
        %v1581 = vpack.c.b16 %v1568, %v1567
        %v1582 = vpack.c.b16 %v1570, %v1569
        %v1583 = vpack.c.b16 %v1572, %v1571
        %v1584 = vpack.c.b16 %v1574, %v1573
        %v1585 = vpack.c.b16 %v1576, %v1575
        %v1586 = vpack.c.b16 %v1578, %v1577
        %1595 = vmatprep.subr.bf16.mxu0 0
        %1596 = vmatpush1.bf16.msra.mxu0 %v1579
        %1597 = vmatprep.subr.bf16.mxu0 0
        %1598 = vmatpush1.bf16.msra.mxu0 %v1580
        %1599 = vmatprep.subr.bf16.mxu0 0
        %1600 = vmatpush1.bf16.msra.mxu0 %v1581
        %1601 = vmatprep.subr.bf16.mxu0 0
        %1602 = vmatpush1.bf16.msra.mxu0 %v1582
        %1603 = vmatprep.subr.bf16.mxu0 0
        %1604 = vmatpush1.bf16.msra.mxu0 %v1583
        %1605 = vmatprep.subr.bf16.mxu0 0
        %1606 = vmatpush1.bf16.msra.mxu0 %v1584
        %1607 = vmatprep.subr.bf16.mxu0 0
        %1608 = vmatpush1.bf16.msra.mxu0 %v1585
        %1609 = vmatprep.subr.bf16.mxu0 0
        %1610 = vmatpush1.bf16.msra.mxu0 %v1586
        %1611 = vmatprep.subr.bf16.mxu0 0
        %1612 = vmatpush1.bf16.msra.mxu0 0
        %1613 = vmatprep.subr.bf16.mxu0 0
        %1614 = vmatpush1.bf16.msra.mxu0 0
        %1615 = vmatprep.subr.bf16.mxu0 0
        %1616 = vmatpush1.bf16.msra.mxu0 0
        %1617 = vmatprep.subr.bf16.mxu0 0
        %1618 = vmatpush1.bf16.msra.mxu0 0
        %1619 = vmatprep.subr.bf16.mxu0 0
        %1620 = vmatpush1.bf16.msra.mxu0 0
        %1621 = vmatprep.subr.bf16.mxu0 0
        %1622 = vmatpush1.bf16.msra.mxu0 0
        %1623 = vmatprep.subr.bf16.mxu0 0
        %1624 = vmatpush1.bf16.msra.mxu0 0
        %1625 = vmatprep.subr.bf16.mxu0 0
        %1626 = vmatpush1.bf16.msra.mxu0 0
        %1627 = vmatprep.mubr.bf16.mxu0 0
        %1628 = vmatmul.mubr.bf16.gmra.mrb[0].mxu0 %v1121
        %v1629 = vpop.f32.mrb[0].mxu0
        %v1630 = vadd.f32 0.0, %v1629
        %v1631 = vpop.f32.mrb[0].mxu0
        %v1632 = vpop.f32.mrb[0].mxu0
        %v1633 = vadd.f32 0.0, %v1632
        %v1634 = vpop.f32.mrb[0].mxu0
        %1635 = vmatprep.mubr.bf16.mxu0 0
        %1636 = vmatmul.mubr.bf16.gmra.mrb[0].mxu0 %v1122
        %v1637 = vpop.f32.mrb[0].mxu0
        %v1638 = vadd.f32 0.0, %v1637
        %v1639 = vpop.f32.mrb[0].mxu0
        %v1640 = vpop.f32.mrb[0].mxu0
        %v1641 = vadd.f32 0.0, %v1640
        %v1642 = vpop.f32.mrb[0].mxu0
        %1643 = vmatprep.mubr.bf16.mxu0 0
        %1644 = vmatmul.mubr.bf16.gmra.mrb[0].mxu0 %v1123
        %v1645 = vpop.f32.mrb[0].mxu0
        %v1646 = vadd.f32 0.0, %v1645
        %v1647 = vpop.f32.mrb[0].mxu0
        %v1648 = vpop.f32.mrb[0].mxu0
        %v1649 = vadd.f32 0.0, %v1648
        %v1650 = vpop.f32.mrb[0].mxu0
        %1651 = vmatprep.mubr.bf16.mxu0 0
        %1652 = vmatmul.mubr.bf16.gmra.mrb[0].mxu0 %v1124
        %v1653 = vpop.f32.mrb[0].mxu0
        %v1654 = vadd.f32 0.0, %v1653
        %v1655 = vpop.f32.mrb[0].mxu0
        %v1656 = vpop.f32.mrb[0].mxu0
        %v1657 = vadd.f32 0.0, %v1656
        %v1658 = vpop.f32.mrb[0].mxu0
        %1659 = vmatprep.mubr.bf16.mxu0 0
        %1660 = vmatmul.mubr.bf16.gmra.mrb[0].mxu0 %v1125
        %v1661 = vpop.f32.mrb[0].mxu0
        %v1662 = vadd.f32 0.0, %v1661
        %v1663 = vpop.f32.mrb[0].mxu0
        %v1664 = vpop.f32.mrb[0].mxu0
        %v1665 = vadd.f32 0.0, %v1664
        %v1666 = vpop.f32.mrb[0].mxu0
        %1667 = vmatprep.mubr.bf16.mxu0 0
        %1668 = vmatmul.mubr.bf16.gmra.mrb[0].mxu0 %v1126
        %v1669 = vpop.f32.mrb[0].mxu0
        %v1670 = vadd.f32 0.0, %v1669
        %v1671 = vpop.f32.mrb[0].mxu0
        %v1672 = vpop.f32.mrb[0].mxu0
        %v1673 = vadd.f32 0.0, %v1672
        %v1674 = vpop.f32.mrb[0].mxu0
        %1675 = vmatprep.mubr.bf16.mxu0 0
        %1676 = vmatmul.mubr.bf16.gmra.mrb[0].mxu0 %v1339
        %v1677 = vpop.f32.mrb[0].mxu0
        %v1678 = vadd.f32 0.0, %v1677
        %v1679 = vpop.f32.mrb[0].mxu0
        %v1680 = vpop.f32.mrb[0].mxu0
        %v1681 = vadd.f32 0.0, %v1680
        %v1682 = vpop.f32.mrb[0].mxu0
        %1683 = vmatprep.mubr.bf16.mxu0 0
        %1684 = vmatmul.mubr.bf16.gmra.mrb[0].mxu0 %v1545
        %v1685 = vpop.f32.mrb[0].mxu0
        %v1686 = vadd.f32 0.0, %v1685
        %v1687 = vpop.f32.mrb[0].mxu0
        %v1688 = vpop.f32.mrb[0].mxu0
        %v1689 = vadd.f32 0.0, %v1688
        %v1690 = vpop.f32.mrb[0].mxu0
        %1691 = vdwg.mxu0
        %v1692 = vadd.f32 %v1486, %v1630
        %v1693 = vadd.f32 %v1487, %v1633
        %v1694 = vadd.f32 %v1488, %v1638
        %v1695 = vadd.f32 %v1489, %v1641
        %v1696 = vadd.f32 %v1490, %v1646
        %v1697 = vadd.f32 %v1491, %v1649
        %v1698 = vadd.f32 %v1492, %v1654
        %v1699 = vadd.f32 %v1493, %v1657
        %v1700 = vadd.f32 %v1494, %v1662
        %v1701 = vadd.f32 %v1495, %v1665
        %v1702 = vadd.f32 %v1496, %v1670
        %v1703 = vadd.f32 %v1497, %v1673
        %v1704 = vadd.f32 %v1498, %v1678
        %v1705 = vadd.f32 %v1499, %v1681
        %v1706 = vadd.f32 %v1500, %v1686
        %v1707 = vadd.f32 %v1501, %v1689
        %v1708 = vld [vmem:[%s267] sm:$0xe]
        %v1709 = vld [vmem:[%s267 + $0xc] sm:$0xe]
        %v1710 = vld [vmem:[%s267 + $0x18] sm:$0xe]
        %v1711 = vld [vmem:[%s267 + $0x24] sm:$0xe]
        %v1712 = vld [vmem:[%s267 + $0x30] sm:$0xe]
        %v1713 = vld [vmem:[%s267 + $0x3c] sm:$0xe]
        %v1714 = vld [vmem:[%s267 + $0x48] sm:$0xe]
        %v1715 = vld [vmem:[%s267 + $0x54] sm:$0xe]
        %v1716 = vld [vmem:[%s267 + $0x60] sm:$0xe]
        %v1717 = vld [vmem:[%s267 + $0x6c] sm:$0xe]
        %vm1742 = vcmask 1042432
        %vm1743 = vcmask 1046532
        %vm1744 = vmor %vm1742, %vm1743
        %v1745 = vrot.slane %v1708, 5
        %v1746 = vrot.slane %v1745, 4
        %v1747 = vrot.slane %v862, 5
        %v1748 = vsel %vm1744, %v1746, %v1747
        %v1749 = vrot.slane %v1747, 4
        %v1750 = vrot.slane %v863, 5
        %v1751 = vsel %vm1744, %v1749, %v1750
        %v1752 = vrot.slane %v1709, 5
        %v1753 = vrot.slane %v1752, 4
        %v1754 = vrot.slane %v865, 5
        %v1755 = vsel %vm1744, %v1753, %v1754
        %v1756 = vrot.slane %v1754, 4
        %v1757 = vrot.slane %v866, 5
        %v1758 = vsel %vm1744, %v1756, %v1757
        %v1759 = vrot.slane %v1710, 5
        %v1760 = vrot.slane %v1759, 4
        %v1761 = vrot.slane %v868, 5
        %v1762 = vsel %vm1744, %v1760, %v1761
        %v1763 = vrot.slane %v1761, 4
        %v1764 = vrot.slane %v869, 5
        %v1765 = vsel %vm1744, %v1763, %v1764
        %v1766 = vrot.slane %v1711, 5
        %v1767 = vrot.slane %v1766, 4
        %v1768 = vrot.slane %v871, 5
        %v1769 = vsel %vm1744, %v1767, %v1768
        %v1770 = vrot.slane %v1768, 4
        %v1771 = vrot.slane %v872, 5
        %v1772 = vsel %vm1744, %v1770, %v1771
        %v1773 = vrot.slane %v1712, 5
        %v1774 = vrot.slane %v1773, 4
        %v1775 = vrot.slane %v874, 5
        %v1776 = vsel %vm1744, %v1774, %v1775
        %v1777 = vrot.slane %v1775, 4
        %v1778 = vrot.slane %v875, 5
        %v1779 = vsel %vm1744, %v1777, %v1778
        %v1780 = vrot.slane %v1713, 5
        %v1781 = vrot.slane %v1780, 4
        %v1782 = vrot.slane %v877, 5
        %v1783 = vsel %vm1744, %v1781, %v1782
        %v1784 = vrot.slane %v1782, 4
        %v1785 = vrot.slane %v878, 5
        %v1786 = vsel %vm1744, %v1784, %v1785
        %v1787 = vrot.slane %v1714, 5
        %v1788 = vrot.slane %v1787, 4
        %v1789 = vrot.slane %v880, 5
        %v1790 = vsel %vm1744, %v1788, %v1789
        %v1791 = vrot.slane %v1789, 4
        %v1792 = vrot.slane %v881, 5
        %v1793 = vsel %vm1744, %v1791, %v1792
        %v1794 = vrot.slane %v1715, 5
        %v1795 = vrot.slane %v1794, 4
        %v1796 = vrot.slane %v883, 5
        %v1797 = vsel %vm1744, %v1795, %v1796
        %v1798 = vrot.slane %v1796, 4
        %v1799 = vrot.slane %v884, 5
        %v1800 = vsel %vm1744, %v1798, %v1799
        %s1801 = scalar_lea.vmem %s271, 128
        %v1802 = vld [vmem:[%s1801] sm:$0xf]
        %v1803 = vld [vmem:[%s1801 + $0x4] sm:$0xf]
        %v1804 = vld [vmem:[%s1801 + $0x8] sm:$0xf]
        %v1805 = vld [vmem:[%s1801 + $0xc] sm:$0xf]
        %v1806 = vld [vmem:[%s1801 + $0x10] sm:$0xf]
        %v1807 = vld [vmem:[%s1801 + $0x14] sm:$0xf]
        %v1808 = vld [vmem:[%s1801 + $0x18] sm:$0xf]
        %v1809 = vld [vmem:[%s1801 + $0x1c] sm:$0xf]
        %v1810 = vld [vmem:[%s1801 + $0x20] sm:$0xf]
        %v1811 = vld [vmem:[%s1801 + $0x24] sm:$0xf]
        %v1812 = vld [vmem:[%s1801 + $0x28] sm:$0xf]
        %v1813 = vld [vmem:[%s1801 + $0x2c] sm:$0xf]
        %v1814 = vld [vmem:[%s1801 + $0x30] sm:$0xf]
        %v1815 = vld [vmem:[%s1801 + $0x34] sm:$0xf]
        %v1816 = vld [vmem:[%s1801 + $0x38] sm:$0xf]
        %v1817 = vld [vmem:[%s1801 + $0x3c] sm:$0xf]
        %v1818 = vunpack.c.l.b16 %v1748
        %v1819 = vunpack.c.l.b16 %v1751
        %v1820 = vunpack.c.l.b16 %v1755
        %v1821 = vunpack.c.l.b16 %v1758
        %v1822 = vunpack.c.l.b16 %v1762
        %v1823 = vunpack.c.l.b16 %v1765
        %v1824 = vunpack.c.l.b16 %v1769
        %v1825 = vunpack.c.l.b16 %v1772
        %v1826 = vunpack.c.l.b16 %v1776
        %v1827 = vunpack.c.l.b16 %v1779
        %v1828 = vunpack.c.l.b16 %v1783
        %v1829 = vunpack.c.l.b16 %v1786
        %v1830 = vunpack.c.l.b16 %v1790
        %v1831 = vunpack.c.l.b16 %v1793
        %v1832 = vunpack.c.l.b16 %v1797
        %v1833 = vunpack.c.l.b16 %v1800
        %v1834 = vpack.c.b16 %v1819, %v1818
        %v1835 = vpack.c.b16 %v1821, %v1820
        %v1836 = vpack.c.b16 %v1823, %v1822
        %v1837 = vpack.c.b16 %v1825, %v1824
        %v1838 = vpack.c.b16 %v1827, %v1826
        %v1839 = vpack.c.b16 %v1829, %v1828
        %v1840 = vpack.c.b16 %v1831, %v1830
        %v1841 = vpack.c.b16 %v1833, %v1832
        %v1866 = vunpack.c.l.b16 %v1802
        %v1867 = vunpack.c.l.b16 %v1803
        %v1868 = vunpack.c.l.b16 %v1804
        %v1869 = vunpack.c.l.b16 %v1805
        %v1870 = vunpack.c.l.b16 %v1806
        %v1871 = vunpack.c.l.b16 %v1807
        %v1872 = vunpack.c.l.b16 %v1808
        %v1873 = vunpack.c.l.b16 %v1809
        %v1874 = vunpack.c.l.b16 %v1810
        %v1875 = vunpack.c.l.b16 %v1811
        %v1876 = vunpack.c.l.b16 %v1812
        %v1877 = vunpack.c.l.b16 %v1813
        %v1878 = vunpack.c.l.b16 %v1814
        %v1879 = vunpack.c.l.b16 %v1815
        %v1880 = vunpack.c.l.b16 %v1816
        %v1881 = vunpack.c.l.b16 %v1817
        %v1882 = vpack.c.b16 %v1867, %v1866
        %v1883 = vpack.c.b16 %v1869, %v1868
        %v1884 = vpack.c.b16 %v1871, %v1870
        %v1885 = vpack.c.b16 %v1873, %v1872
        %v1886 = vpack.c.b16 %v1875, %v1874
        %v1887 = vpack.c.b16 %v1877, %v1876
        %v1888 = vpack.c.b16 %v1879, %v1878
        %v1889 = vpack.c.b16 %v1881, %v1880
        %1898 = vmatprep.subr.bf16.mxu0 0
        %1899 = vmatpush1.bf16.msra.mxu0 %v1882
        %1900 = vmatprep.subr.bf16.mxu0 0
        %1901 = vmatpush1.bf16.msra.mxu0 %v1883
        %1902 = vmatprep.subr.bf16.mxu0 0
        %1903 = vmatpush1.bf16.msra.mxu0 %v1884
        %1904 = vmatprep.subr.bf16.mxu0 0
        %1905 = vmatpush1.bf16.msra.mxu0 %v1885
        %1906 = vmatprep.subr.bf16.mxu0 0
        %1907 = vmatpush1.bf16.msra.mxu0 %v1886
        %1908 = vmatprep.subr.bf16.mxu0 0
        %1909 = vmatpush1.bf16.msra.mxu0 %v1887
        %1910 = vmatprep.subr.bf16.mxu0 0
        %1911 = vmatpush1.bf16.msra.mxu0 %v1888
        %1912 = vmatprep.subr.bf16.mxu0 0
        %1913 = vmatpush1.bf16.msra.mxu0 %v1889
        %1914 = vmatprep.subr.bf16.mxu0 0
        %1915 = vmatpush1.bf16.msra.mxu0 0
        %1916 = vmatprep.subr.bf16.mxu0 0
        %1917 = vmatpush1.bf16.msra.mxu0 0
        %1918 = vmatprep.subr.bf16.mxu0 0
        %1919 = vmatpush1.bf16.msra.mxu0 0
        %1920 = vmatprep.subr.bf16.mxu0 0
        %1921 = vmatpush1.bf16.msra.mxu0 0
        %1922 = vmatprep.subr.bf16.mxu0 0
        %1923 = vmatpush1.bf16.msra.mxu0 0
        %1924 = vmatprep.subr.bf16.mxu0 0
        %1925 = vmatpush1.bf16.msra.mxu0 0
        %1926 = vmatprep.subr.bf16.mxu0 0
        %1927 = vmatpush1.bf16.msra.mxu0 0
        %1928 = vmatprep.subr.bf16.mxu0 0
        %1929 = vmatpush1.bf16.msra.mxu0 0
        %1930 = vmatprep.mubr.bf16.mxu0 0
        %1931 = vmatmul.mubr.bf16.gmra.mrb[0].mxu0 %v1834
        %v1932 = vpop.f32.mrb[0].mxu0
        %v1933 = vadd.f32 0.0, %v1932
        %v1934 = vpop.f32.mrb[0].mxu0
        %v1935 = vpop.f32.mrb[0].mxu0
        %v1936 = vadd.f32 0.0, %v1935
        %v1937 = vpop.f32.mrb[0].mxu0
        %1938 = vmatprep.mubr.bf16.mxu0 0
        %1939 = vmatmul.mubr.bf16.gmra.mrb[0].mxu0 %v1835
        %v1940 = vpop.f32.mrb[0].mxu0
        %v1941 = vadd.f32 0.0, %v1940
        %v1942 = vpop.f32.mrb[0].mxu0
        %v1943 = vpop.f32.mrb[0].mxu0
        %v1944 = vadd.f32 0.0, %v1943
        %v1945 = vpop.f32.mrb[0].mxu0
        %1946 = vmatprep.mubr.bf16.mxu0 0
        %1947 = vmatmul.mubr.bf16.gmra.mrb[0].mxu0 %v1836
        %v1948 = vpop.f32.mrb[0].mxu0
        %v1949 = vadd.f32 0.0, %v1948
        %v1950 = vpop.f32.mrb[0].mxu0
        %v1951 = vpop.f32.mrb[0].mxu0
        %v1952 = vadd.f32 0.0, %v1951
        %v1953 = vpop.f32.mrb[0].mxu0
        %1954 = vmatprep.mubr.bf16.mxu0 0
        %1955 = vmatmul.mubr.bf16.gmra.mrb[0].mxu0 %v1837
        %v1956 = vpop.f32.mrb[0].mxu0
        %v1957 = vadd.f32 0.0, %v1956
        %v1958 = vpop.f32.mrb[0].mxu0
        %v1959 = vpop.f32.mrb[0].mxu0
        %v1960 = vadd.f32 0.0, %v1959
        %v1961 = vpop.f32.mrb[0].mxu0
        %1962 = vmatprep.mubr.bf16.mxu0 0
        %1963 = vmatmul.mubr.bf16.gmra.mrb[0].mxu0 %v1838
        %v1964 = vpop.f32.mrb[0].mxu0
        %v1965 = vadd.f32 0.0, %v1964
        %v1966 = vpop.f32.mrb[0].mxu0
        %v1967 = vpop.f32.mrb[0].mxu0
        %v1968 = vadd.f32 0.0, %v1967
        %v1969 = vpop.f32.mrb[0].mxu0
        %1970 = vmatprep.mubr.bf16.mxu0 0
        %1971 = vmatmul.mubr.bf16.gmra.mrb[0].mxu0 %v1839
        %v1972 = vpop.f32.mrb[0].mxu0
        %v1973 = vadd.f32 0.0, %v1972
        %v1974 = vpop.f32.mrb[0].mxu0
        %v1975 = vpop.f32.mrb[0].mxu0
        %v1976 = vadd.f32 0.0, %v1975
        %v1977 = vpop.f32.mrb[0].mxu0
        %1978 = vmatprep.mubr.bf16.mxu0 0
        %1979 = vmatmul.mubr.bf16.gmra.mrb[0].mxu0 %v1840
        %v1980 = vpop.f32.mrb[0].mxu0
        %v1981 = vadd.f32 0.0, %v1980
        %v1982 = vpop.f32.mrb[0].mxu0
        %v1983 = vpop.f32.mrb[0].mxu0
        %v1984 = vadd.f32 0.0, %v1983
        %v1985 = vpop.f32.mrb[0].mxu0
        %1986 = vmatprep.mubr.bf16.mxu0 0
        %1987 = vmatmul.mubr.bf16.gmra.mrb[0].mxu0 %v1841
        %v1988 = vpop.f32.mrb[0].mxu0
        %v1989 = vadd.f32 0.0, %v1988
        %v1990 = vpop.f32.mrb[0].mxu0
        %v1991 = vpop.f32.mrb[0].mxu0
        %v1992 = vadd.f32 0.0, %v1991
        %v1993 = vpop.f32.mrb[0].mxu0
        %1994 = vdwg.mxu0
        %v1995 = vadd.f32 %v1692, %v1933
        %v1996 = vadd.f32 %v1693, %v1936
        %v1997 = vadd.f32 %v1694, %v1941
        %v1998 = vadd.f32 %v1695, %v1944
        %v1999 = vadd.f32 %v1696, %v1949
        %v2000 = vadd.f32 %v1697, %v1952
        %v2001 = vadd.f32 %v1698, %v1957
        %v2002 = vadd.f32 %v1699, %v1960
        %v2003 = vadd.f32 %v1700, %v1965
        %v2004 = vadd.f32 %v1701, %v1968
        %v2005 = vadd.f32 %v1702, %v1973
        %v2006 = vadd.f32 %v1703, %v1976
        %v2007 = vadd.f32 %v1704, %v1981
        %v2008 = vadd.f32 %v1705, %v1984
        %v2009 = vadd.f32 %v1706, %v1989
        %v2010 = vadd.f32 %v1707, %v1992
        %v2014 = vrot.slane %v1716, 5
        %v2015 = vrot.slane %v2014, 4
        %v2016 = vrot.slane %v886, 5
        %v2017 = vsel %vm1744, %v2015, %v2016
        %v2018 = vrot.slane %v2016, 4
        %v2019 = vrot.slane %v887, 5
        %v2020 = vsel %vm1744, %v2018, %v2019
        %s2021 = scalar_lea.vmem %s271, 320
        %v2022 = vld [vmem:[%s2021] sm:$0xf]
        %v2023 = vld [vmem:[%s2021 + $0x4] sm:$0xf]
        %v2024 = vld [vmem:[%s2021 + $0x8] sm:$0xf]
        %v2025 = vld [vmem:[%s2021 + $0xc] sm:$0xf]
        %v2026 = vld [vmem:[%s2021 + $0x10] sm:$0xf]
        %v2027 = vld [vmem:[%s2021 + $0x14] sm:$0xf]
        %v2028 = vld [vmem:[%s2021 + $0x18] sm:$0xf]
        %v2029 = vld [vmem:[%s2021 + $0x1c] sm:$0xf]
        %v2030 = vld [vmem:[%s2021 + $0x20] sm:$0xf]
        %v2031 = vld [vmem:[%s2021 + $0x24] sm:$0xf]
        %v2032 = vld [vmem:[%s2021 + $0x28] sm:$0xf]
        %v2033 = vld [vmem:[%s2021 + $0x2c] sm:$0xf]
        %v2034 = vld [vmem:[%s2021 + $0x30] sm:$0xf]
        %v2035 = vld [vmem:[%s2021 + $0x34] sm:$0xf]
        %v2036 = vld [vmem:[%s2021 + $0x38] sm:$0xf]
        %v2037 = vld [vmem:[%s2021 + $0x3c] sm:$0xf]
        %v2038 = vunpack.c.l.b16 %v2017
        %v2039 = vunpack.c.l.b16 %v2020
        %v2040 = vpack.c.b16 %v2039, %v2038
        %v2058 = vunpack.c.l.b16 %v2022
        %v2059 = vunpack.c.l.b16 %v2023
        %v2060 = vunpack.c.l.b16 %v2024
        %v2061 = vunpack.c.l.b16 %v2025
        %v2062 = vunpack.c.l.b16 %v2026
        %v2063 = vunpack.c.l.b16 %v2027
        %v2064 = vunpack.c.l.b16 %v2028
        %v2065 = vunpack.c.l.b16 %v2029
        %v2066 = vunpack.c.l.b16 %v2030
        %v2067 = vunpack.c.l.b16 %v2031
        %v2068 = vunpack.c.l.b16 %v2032
        %v2069 = vunpack.c.l.b16 %v2033
        %v2070 = vunpack.c.l.b16 %v2034
        %v2071 = vunpack.c.l.b16 %v2035
        %v2072 = vunpack.c.l.b16 %v2036
        %v2073 = vunpack.c.l.b16 %v2037
        %v2074 = vpack.c.b16 %v2059, %v2058
        %v2075 = vpack.c.b16 %v2061, %v2060
        %v2076 = vpack.c.b16 %v2063, %v2062
        %v2077 = vpack.c.b16 %v2065, %v2064
        %v2078 = vpack.c.b16 %v2067, %v2066
        %v2079 = vpack.c.b16 %v2069, %v2068
        %v2080 = vpack.c.b16 %v2071, %v2070
        %v2081 = vpack.c.b16 %v2073, %v2072
        %2090 = vmatprep.subr.bf16.mxu0 0
        %2091 = vmatpush1.bf16.msra.mxu0 %v2074
        %2092 = vmatprep.subr.bf16.mxu0 0
        %2093 = vmatpush1.bf16.msra.mxu0 %v2075
        %2094 = vmatprep.subr.bf16.mxu0 0
        %2095 = vmatpush1.bf16.msra.mxu0 %v2076
        %2096 = vmatprep.subr.bf16.mxu0 0
        %2097 = vmatpush1.bf16.msra.mxu0 %v2077
        %2098 = vmatprep.subr.bf16.mxu0 0
        %2099 = vmatpush1.bf16.msra.mxu0 %v2078
        %2100 = vmatprep.subr.bf16.mxu0 0
        %2101 = vmatpush1.bf16.msra.mxu0 %v2079
        %2102 = vmatprep.subr.bf16.mxu0 0
        %2103 = vmatpush1.bf16.msra.mxu0 %v2080
        %2104 = vmatprep.subr.bf16.mxu0 0
        %2105 = vmatpush1.bf16.msra.mxu0 %v2081
        %2106 = vmatprep.subr.bf16.mxu0 0
        %2107 = vmatpush1.bf16.msra.mxu0 0
        %2108 = vmatprep.subr.bf16.mxu0 0
        %2109 = vmatpush1.bf16.msra.mxu0 0
        %2110 = vmatprep.subr.bf16.mxu0 0
        %2111 = vmatpush1.bf16.msra.mxu0 0
        %2112 = vmatprep.subr.bf16.mxu0 0
        %2113 = vmatpush1.bf16.msra.mxu0 0
        %2114 = vmatprep.subr.bf16.mxu0 0
        %2115 = vmatpush1.bf16.msra.mxu0 0
        %2116 = vmatprep.subr.bf16.mxu0 0
        %2117 = vmatpush1.bf16.msra.mxu0 0
        %2118 = vmatprep.subr.bf16.mxu0 0
        %2119 = vmatpush1.bf16.msra.mxu0 0
        %2120 = vmatprep.subr.bf16.mxu0 0
        %2121 = vmatpush1.bf16.msra.mxu0 0
        %2122 = vmatprep.mubr.bf16.mxu0 0
        %2123 = vmatmul.mubr.bf16.gmra.mrb[0].mxu0 %v1835
        %v2124 = vpop.f32.mrb[0].mxu0
        %v2125 = vadd.f32 0.0, %v2124
        %v2126 = vpop.f32.mrb[0].mxu0
        %v2127 = vpop.f32.mrb[0].mxu0
        %v2128 = vadd.f32 0.0, %v2127
        %v2129 = vpop.f32.mrb[0].mxu0
        %2130 = vmatprep.mubr.bf16.mxu0 0
        %2131 = vmatmul.mubr.bf16.gmra.mrb[0].mxu0 %v1836
        %v2132 = vpop.f32.mrb[0].mxu0
        %v2133 = vadd.f32 0.0, %v2132
        %v2134 = vpop.f32.mrb[0].mxu0
        %v2135 = vpop.f32.mrb[0].mxu0
        %v2136 = vadd.f32 0.0, %v2135
        %v2137 = vpop.f32.mrb[0].mxu0
        %2138 = vmatprep.mubr.bf16.mxu0 0
        %2139 = vmatmul.mubr.bf16.gmra.mrb[0].mxu0 %v1837
        %v2140 = vpop.f32.mrb[0].mxu0
        %v2141 = vadd.f32 0.0, %v2140
        %v2142 = vpop.f32.mrb[0].mxu0
        %v2143 = vpop.f32.mrb[0].mxu0
        %v2144 = vadd.f32 0.0, %v2143
        %v2145 = vpop.f32.mrb[0].mxu0
        %2146 = vmatprep.mubr.bf16.mxu0 0
        %2147 = vmatmul.mubr.bf16.gmra.mrb[0].mxu0 %v1838
        %v2148 = vpop.f32.mrb[0].mxu0
        %v2149 = vadd.f32 0.0, %v2148
        %v2150 = vpop.f32.mrb[0].mxu0
        %v2151 = vpop.f32.mrb[0].mxu0
        %v2152 = vadd.f32 0.0, %v2151
        %v2153 = vpop.f32.mrb[0].mxu0
        %2154 = vmatprep.mubr.bf16.mxu0 0
        %2155 = vmatmul.mubr.bf16.gmra.mrb[0].mxu0 %v1839
        %v2156 = vpop.f32.mrb[0].mxu0
        %v2157 = vadd.f32 0.0, %v2156
        %v2158 = vpop.f32.mrb[0].mxu0
        %v2159 = vpop.f32.mrb[0].mxu0
        %v2160 = vadd.f32 0.0, %v2159
        %v2161 = vpop.f32.mrb[0].mxu0
        %2162 = vmatprep.mubr.bf16.mxu0 0
        %2163 = vmatmul.mubr.bf16.gmra.mrb[0].mxu0 %v1840
        %v2164 = vpop.f32.mrb[0].mxu0
        %v2165 = vadd.f32 0.0, %v2164
        %v2166 = vpop.f32.mrb[0].mxu0
        %v2167 = vpop.f32.mrb[0].mxu0
        %v2168 = vadd.f32 0.0, %v2167
        %v2169 = vpop.f32.mrb[0].mxu0
        %2170 = vmatprep.mubr.bf16.mxu0 0
        %2171 = vmatmul.mubr.bf16.gmra.mrb[0].mxu0 %v1841
        %v2172 = vpop.f32.mrb[0].mxu0
        %v2173 = vadd.f32 0.0, %v2172
        %v2174 = vpop.f32.mrb[0].mxu0
        %v2175 = vpop.f32.mrb[0].mxu0
        %v2176 = vadd.f32 0.0, %v2175
        %v2177 = vpop.f32.mrb[0].mxu0
        %2178 = vmatprep.mubr.bf16.mxu0 0
        %2179 = vmatmul.mubr.bf16.gmra.mrb[0].mxu0 %v2040
        %v2180 = vpop.f32.mrb[0].mxu0
        %v2181 = vadd.f32 0.0, %v2180
        %v2182 = vpop.f32.mrb[0].mxu0
        %v2183 = vpop.f32.mrb[0].mxu0
        %v2184 = vadd.f32 0.0, %v2183
        %v2185 = vpop.f32.mrb[0].mxu0
        %2186 = vdwg.mxu0
        %v2187 = vadd.f32 %v1995, %v2125
        %v2188 = vadd.f32 %v1996, %v2128
        %v2189 = vadd.f32 %v1997, %v2133
        %v2190 = vadd.f32 %v1998, %v2136
        %v2191 = vadd.f32 %v1999, %v2141
        %v2192 = vadd.f32 %v2000, %v2144
        %v2193 = vadd.f32 %v2001, %v2149
        %v2194 = vadd.f32 %v2002, %v2152
        %v2195 = vadd.f32 %v2003, %v2157
        %v2196 = vadd.f32 %v2004, %v2160
        %v2197 = vadd.f32 %v2005, %v2165
        %v2198 = vadd.f32 %v2006, %v2168
        %v2199 = vadd.f32 %v2007, %v2173
        %v2200 = vadd.f32 %v2008, %v2176
        %v2201 = vadd.f32 %v2009, %v2181
        %v2202 = vadd.f32 %v2010, %v2184
        %v2206 = vrot.slane %v1717, 5
        %v2207 = vrot.slane %v2206, 4
        %v2208 = vrot.slane %v889, 5
        %v2209 = vsel %vm1744, %v2207, %v2208
        %v2210 = vrot.slane %v2208, 4
        %v2211 = vrot.slane %v890, 5
        %v2212 = vsel %vm1744, %v2210, %v2211
        %s2213 = scalar_lea.vmem %s271, 512
        %v2214 = vld [vmem:[%s2213] sm:$0xf]
        %v2215 = vld [vmem:[%s2213 + $0x4] sm:$0xf]
        %v2216 = vld [vmem:[%s2213 + $0x8] sm:$0xf]
        %v2217 = vld [vmem:[%s2213 + $0xc] sm:$0xf]
        %v2218 = vld [vmem:[%s2213 + $0x10] sm:$0xf]
        %v2219 = vld [vmem:[%s2213 + $0x14] sm:$0xf]
        %v2220 = vld [vmem:[%s2213 + $0x18] sm:$0xf]
        %v2221 = vld [vmem:[%s2213 + $0x1c] sm:$0xf]
        %v2222 = vld [vmem:[%s2213 + $0x20] sm:$0xf]
        %v2223 = vld [vmem:[%s2213 + $0x24] sm:$0xf]
        %v2224 = vld [vmem:[%s2213 + $0x28] sm:$0xf]
        %v2225 = vld [vmem:[%s2213 + $0x2c] sm:$0xf]
        %v2226 = vld [vmem:[%s2213 + $0x30] sm:$0xf]
        %v2227 = vld [vmem:[%s2213 + $0x34] sm:$0xf]
        %v2228 = vld [vmem:[%s2213 + $0x38] sm:$0xf]
        %v2229 = vld [vmem:[%s2213 + $0x3c] sm:$0xf]
        %v2230 = vunpack.c.l.b16 %v2209
        %v2231 = vunpack.c.l.b16 %v2212
        %v2232 = vpack.c.b16 %v2231, %v2230
        %v2250 = vunpack.c.l.b16 %v2214
        %v2251 = vunpack.c.l.b16 %v2215
        %v2252 = vunpack.c.l.b16 %v2216
        %v2253 = vunpack.c.l.b16 %v2217
        %v2254 = vunpack.c.l.b16 %v2218
        %v2255 = vunpack.c.l.b16 %v2219
        %v2256 = vunpack.c.l.b16 %v2220
        %v2257 = vunpack.c.l.b16 %v2221
        %v2258 = vunpack.c.l.b16 %v2222
        %v2259 = vunpack.c.l.b16 %v2223
        %v2260 = vunpack.c.l.b16 %v2224
        %v2261 = vunpack.c.l.b16 %v2225
        %v2262 = vunpack.c.l.b16 %v2226
        %v2263 = vunpack.c.l.b16 %v2227
        %v2264 = vunpack.c.l.b16 %v2228
        %v2265 = vunpack.c.l.b16 %v2229
        %v2266 = vpack.c.b16 %v2251, %v2250
        %v2267 = vpack.c.b16 %v2253, %v2252
        %v2268 = vpack.c.b16 %v2255, %v2254
        %v2269 = vpack.c.b16 %v2257, %v2256
        %v2270 = vpack.c.b16 %v2259, %v2258
        %v2271 = vpack.c.b16 %v2261, %v2260
        %v2272 = vpack.c.b16 %v2263, %v2262
        %v2273 = vpack.c.b16 %v2265, %v2264
        %2282 = vmatprep.subr.bf16.mxu0 0
        %2283 = vmatpush1.bf16.msra.mxu0 %v2266
        %2284 = vmatprep.subr.bf16.mxu0 0
        %2285 = vmatpush1.bf16.msra.mxu0 %v2267
        %2286 = vmatprep.subr.bf16.mxu0 0
        %2287 = vmatpush1.bf16.msra.mxu0 %v2268
        %2288 = vmatprep.subr.bf16.mxu0 0
        %2289 = vmatpush1.bf16.msra.mxu0 %v2269
        %2290 = vmatprep.subr.bf16.mxu0 0
        %2291 = vmatpush1.bf16.msra.mxu0 %v2270
        %2292 = vmatprep.subr.bf16.mxu0 0
        %2293 = vmatpush1.bf16.msra.mxu0 %v2271
        %2294 = vmatprep.subr.bf16.mxu0 0
        %2295 = vmatpush1.bf16.msra.mxu0 %v2272
        %2296 = vmatprep.subr.bf16.mxu0 0
        %2297 = vmatpush1.bf16.msra.mxu0 %v2273
        %2298 = vmatprep.subr.bf16.mxu0 0
        %2299 = vmatpush1.bf16.msra.mxu0 0
        %2300 = vmatprep.subr.bf16.mxu0 0
        %2301 = vmatpush1.bf16.msra.mxu0 0
        %2302 = vmatprep.subr.bf16.mxu0 0
        %2303 = vmatpush1.bf16.msra.mxu0 0
        %2304 = vmatprep.subr.bf16.mxu0 0
        %2305 = vmatpush1.bf16.msra.mxu0 0
        %2306 = vmatprep.subr.bf16.mxu0 0
        %2307 = vmatpush1.bf16.msra.mxu0 0
        %2308 = vmatprep.subr.bf16.mxu0 0
        %2309 = vmatpush1.bf16.msra.mxu0 0
        %2310 = vmatprep.subr.bf16.mxu0 0
        %2311 = vmatpush1.bf16.msra.mxu0 0
        %2312 = vmatprep.subr.bf16.mxu0 0
        %2313 = vmatpush1.bf16.msra.mxu0 0
        %2314 = vmatprep.mubr.bf16.mxu0 0
        %2315 = vmatmul.mubr.bf16.gmra.mrb[0].mxu0 %v1836
        %v2316 = vpop.f32.mrb[0].mxu0
        %v2317 = vadd.f32 0.0, %v2316
        %v2318 = vpop.f32.mrb[0].mxu0
        %v2319 = vpop.f32.mrb[0].mxu0
        %v2320 = vadd.f32 0.0, %v2319
        %v2321 = vpop.f32.mrb[0].mxu0
        %2322 = vmatprep.mubr.bf16.mxu0 0
        %2323 = vmatmul.mubr.bf16.gmra.mrb[0].mxu0 %v1837
        %v2324 = vpop.f32.mrb[0].mxu0
        %v2325 = vadd.f32 0.0, %v2324
        %v2326 = vpop.f32.mrb[0].mxu0
        %v2327 = vpop.f32.mrb[0].mxu0
        %v2328 = vadd.f32 0.0, %v2327
        %v2329 = vpop.f32.mrb[0].mxu0
        %2330 = vmatprep.mubr.bf16.mxu0 0
        %2331 = vmatmul.mubr.bf16.gmra.mrb[0].mxu0 %v1838
        %v2332 = vpop.f32.mrb[0].mxu0
        %v2333 = vadd.f32 0.0, %v2332
        %v2334 = vpop.f32.mrb[0].mxu0
        %v2335 = vpop.f32.mrb[0].mxu0
        %v2336 = vadd.f32 0.0, %v2335
        %v2337 = vpop.f32.mrb[0].mxu0
        %2338 = vmatprep.mubr.bf16.mxu0 0
        %2339 = vmatmul.mubr.bf16.gmra.mrb[0].mxu0 %v1839
        %v2340 = vpop.f32.mrb[0].mxu0
        %v2341 = vadd.f32 0.0, %v2340
        %v2342 = vpop.f32.mrb[0].mxu0
        %v2343 = vpop.f32.mrb[0].mxu0
        %v2344 = vadd.f32 0.0, %v2343
        %v2345 = vpop.f32.mrb[0].mxu0
        %2346 = vmatprep.mubr.bf16.mxu0 0
        %2347 = vmatmul.mubr.bf16.gmra.mrb[0].mxu0 %v1840
        %v2348 = vpop.f32.mrb[0].mxu0
        %v2349 = vadd.f32 0.0, %v2348
        %v2350 = vpop.f32.mrb[0].mxu0
        %v2351 = vpop.f32.mrb[0].mxu0
        %v2352 = vadd.f32 0.0, %v2351
        %v2353 = vpop.f32.mrb[0].mxu0
        %2354 = vmatprep.mubr.bf16.mxu0 0
        %2355 = vmatmul.mubr.bf16.gmra.mrb[0].mxu0 %v1841
        %v2356 = vpop.f32.mrb[0].mxu0
        %v2357 = vadd.f32 0.0, %v2356
        %v2358 = vpop.f32.mrb[0].mxu0
        %v2359 = vpop.f32.mrb[0].mxu0
        %v2360 = vadd.f32 0.0, %v2359
        %v2361 = vpop.f32.mrb[0].mxu0
        %2362 = vmatprep.mubr.bf16.mxu0 0
        %2363 = vmatmul.mubr.bf16.gmra.mrb[0].mxu0 %v2040
        %v2364 = vpop.f32.mrb[0].mxu0
        %v2365 = vadd.f32 0.0, %v2364
        %v2366 = vpop.f32.mrb[0].mxu0
        %v2367 = vpop.f32.mrb[0].mxu0
        %v2368 = vadd.f32 0.0, %v2367
        %v2369 = vpop.f32.mrb[0].mxu0
        %2370 = vmatprep.mubr.bf16.mxu0 0
        %2371 = vmatmul.mubr.bf16.gmra.mrb[0].mxu0 %v2232
        %v2372 = vpop.f32.mrb[0].mxu0
        %v2373 = vadd.f32 0.0, %v2372
        %v2374 = vpop.f32.mrb[0].mxu0
        %v2375 = vpop.f32.mrb[0].mxu0
        %v2376 = vadd.f32 0.0, %v2375
        %v2377 = vpop.f32.mrb[0].mxu0
        %2378 = vdwg.mxu0
        %v2379 = vadd.f32 %v2187, %v2317
        %v2380 = vadd.f32 %v2188, %v2320
        %v2381 = vadd.f32 %v2189, %v2325
        %v2382 = vadd.f32 %v2190, %v2328
        %v2383 = vadd.f32 %v2191, %v2333
        %v2384 = vadd.f32 %v2192, %v2336
        %v2385 = vadd.f32 %v2193, %v2341
        %v2386 = vadd.f32 %v2194, %v2344
        %v2387 = vadd.f32 %v2195, %v2349
        %v2388 = vadd.f32 %v2196, %v2352
        %v2389 = vadd.f32 %v2197, %v2357
        %v2390 = vadd.f32 %v2198, %v2360
        %v2391 = vadd.f32 %v2199, %v2365
        %v2392 = vadd.f32 %v2200, %v2368
        %v2393 = vadd.f32 %v2201, %v2373
        %v2394 = vadd.f32 %v2202, %v2376
        %v2395 = vld [vmem:[%s274] sm:$0x1]
        %v2397 = vlaneseq
        %v2398 = vshrl.u32 %v2397, 7
        %v2399 = vsub.s32 0, %v2398
        %v2400 = vrot.slane %v2395, %v2399
        %v2402 = vmul.f32 %v2379, %v2400
        %v2403 = vmul.f32 %v2380, %v2400
        %v2404 = vmul.f32 %v2381, %v2400
        %v2405 = vmul.f32 %v2382, %v2400
        %v2406 = vmul.f32 %v2383, %v2400
        %v2407 = vmul.f32 %v2384, %v2400
        %v2408 = vmul.f32 %v2385, %v2400
        %v2409 = vmul.f32 %v2386, %v2400
        %v2410 = vmul.f32 %v2387, %v2400
        %v2411 = vmul.f32 %v2388, %v2400
        %v2412 = vmul.f32 %v2389, %v2400
        %v2413 = vmul.f32 %v2390, %v2400
        %v2414 = vmul.f32 %v2391, %v2400
        %v2415 = vmul.f32 %v2392, %v2400
        %v2416 = vmul.f32 %v2393, %v2400
        %v2417 = vmul.f32 %v2394, %v2400
        %v2418 = vld [vmem:[%s277] sm:$0x1]
        %v2420 = vlaneseq
        %v2421 = vshrl.u32 %v2420, 7
        %v2422 = vsub.s32 0, %v2421
        %v2423 = vrot.slane %v2418, %v2422
        %v2425 = vadd.f32 %v2402, %v2423
        %v2426 = vadd.f32 %v2403, %v2423
        %v2427 = vadd.f32 %v2404, %v2423
        %v2428 = vadd.f32 %v2405, %v2423
        %v2429 = vadd.f32 %v2406, %v2423
        %v2430 = vadd.f32 %v2407, %v2423
        %v2431 = vadd.f32 %v2408, %v2423
        %v2432 = vadd.f32 %v2409, %v2423
        %v2433 = vadd.f32 %v2410, %v2423
        %v2434 = vadd.f32 %v2411, %v2423
        %v2435 = vadd.f32 %v2412, %v2423
        %v2436 = vadd.f32 %v2413, %v2423
        %v2437 = vadd.f32 %v2414, %v2423
        %v2438 = vadd.f32 %v2415, %v2423
        %v2439 = vadd.f32 %v2416, %v2423
        %v2440 = vadd.f32 %v2417, %v2423
        %v2441 = vmax.f32 %v2425, 0.0
        %v2442 = vmax.f32 %v2426, 0.0
        %v2443 = vmax.f32 %v2427, 0.0
        %v2444 = vmax.f32 %v2428, 0.0
        %v2445 = vmax.f32 %v2429, 0.0
        %v2446 = vmax.f32 %v2430, 0.0
        %v2447 = vmax.f32 %v2431, 0.0
        %v2448 = vmax.f32 %v2432, 0.0
        %v2449 = vmax.f32 %v2433, 0.0
        %v2450 = vmax.f32 %v2434, 0.0
        %v2451 = vmax.f32 %v2435, 0.0
        %v2452 = vmax.f32 %v2436, 0.0
        %v2453 = vmax.f32 %v2437, 0.0
        %v2454 = vmax.f32 %v2438, 0.0
        %v2455 = vmax.f32 %v2439, 0.0
        %v2456 = vmax.f32 %v2440, 0.0
        %2457 = vst [vmem:[%s258] sm:$0xff] %v2441
        %2458 = vst [vmem:[%s258 + $0x8] sm:$0xff] %v2442
        %2459 = vst [vmem:[%s258 + $0x10] sm:$0xff] %v2443
        %2460 = vst [vmem:[%s258 + $0x18] sm:$0xff] %v2444
        %2461 = vst [vmem:[%s258 + $0x20] sm:$0xff] %v2445
        %2462 = vst [vmem:[%s258 + $0x28] sm:$0xff] %v2446
        %2463 = vst [vmem:[%s258 + $0x30] sm:$0xff] %v2447
        %2464 = vst [vmem:[%s258 + $0x38] sm:$0xff] %v2448
        %2465 = vst [vmem:[%s258 + $0x40] sm:$0xff] %v2449
        %2466 = vst [vmem:[%s258 + $0x48] sm:$0xff] %v2450
        %2467 = vst [vmem:[%s258 + $0x50] sm:$0xff] %v2451
        %2468 = vst [vmem:[%s258 + $0x58] sm:$0xff] %v2452
        %2469 = vst [vmem:[%s258 + $0x60] sm:$0xff] %v2453
        %2470 = vst [vmem:[%s258 + $0x68] sm:$0xff] %v2454
        %2471 = vst [vmem:[%s258 + $0x70] sm:$0xff] %v2455
        %2472 = vst [vmem:[%s258 + $0x78] sm:$0xff] %v2456
        %s2473 = sand.u32 %s155, 1
        %s2474 = scalar_lea.sflag [#allocation3], %s2473
        %s2475 = sand.u32 %s155, 1
        %s2476 = smul.addr %s2475, 128
        %s2477 = scalar_lea.vmem [#allocation2], %s2476
        // Predicated region
        $region37: #{tpu_custom_call.1} parent=35 // pred_check
          %p2478 = pneg %p165
        $region38: #{tpu_custom_call.1} parent=35 // pred_check_branch
          %2480 = sbr.rel (%p2478) target = $region40
        $region39: #{tpu_custom_call.1} parent=35 // pred_region
          %s2481 = smul.u32 16, %s24
          %s2483 = ssub.s32 2048, 2048
          %2484 = vsyncadd %s2474, %s2483
          %s2485 = sadd.s32 %s25, %s2481
          %s2486 = smul.addr %s23, 32
          %s2487 = sadd.s32 %s2485, %s2486
          %s2488 = smul.addr %s2487, 128
          %s2489 = scalar_lea.hbm %s4, %s2488
          %s2490 = sshll.u32 %s2477, 4
          %s2491 = int_to_ptr.vmem [resolvable:$true] %s2490
          %2496 = dma.vmem_to_hbm [thread:$0]  %s2491, 2048, %s2489, %s2474, 128, 128, 8
        $region40: #{tpu_custom_call.1} parent=35 // pred_fallthru
          _
      $region36: #{tpu_custom_call.1} parent=5 // pred_fallthru
        _
      %p2497 = scmp.le.s32.totalorder 2, %s13
      // Predicated region
      $region41: #{tpu_custom_call.1} parent=5 // pred_check
        %p2498 = pneg %p2497
      $region42: #{tpu_custom_call.1} parent=5 // pred_check_branch
        %2500 = sbr.rel (%p2498) target = $region44
      $region43: #{tpu_custom_call.1} parent=5 // pred_region
        %s2501 = ssub.s32 %s13, 2
        // Predicated region
        $region45: #{tpu_custom_call.1} parent=43 // pred_check
          %p2502 = pneg %p171
        $region46: #{tpu_custom_call.1} parent=43 // pred_check_branch
          %2504 = sbr.rel (%p2502) target = $region48
        $region47: #{tpu_custom_call.1} parent=43 // pred_region
          %s2505 = sand.u32 %s156, 1
          %s2506 = scalar_lea.sflag [#allocation3], %s2505
          %s2507 = sand.u32 %s156, 1
          %s2508 = smul.addr %s2507, 128
          %s2509 = scalar_lea.vmem [#allocation2], %s2508
          %2510 = dma.done %s2506, 2048
        $region48: #{tpu_custom_call.1} parent=43 // pred_fallthru
          _
      $region44: #{tpu_custom_call.1} parent=5 // pred_fallthru
        _
    $region6: #{tpu_custom_call.1} parent=1 // loop_footer
      %s17 = sadd.s32 1, %s13
    $region7: #{tpu_custom_call.1} parent=1 // loop_footer_branch
      %12 = sbr.rel target = $region3
    $region8: #{tpu_custom_call.1} parent=1 // loop_exit
      _
    %2511 = vsyncpa [#allocation3], 1
    %s2512 = scalar_lea.sflag [#allocation3], 1
    %2513 = vsyncpa %s2512, 1

</llo_original>
